<compile_context>
chip_gen: v5e
topology: v5e:2x2
jax: 0.10.0
libtpu: 0.0.40
codegen_flags: <defaults>
</compile_context>

<pallas_src>
import jax
import jax.numpy as jnp
from jax.experimental import pallas as pl
from jax.experimental.pallas import tpu as pltpu


# ----------------------------- Pallas kernel ---------------------------------
def enc_gru_ln_kernel(x_ref,       # (B, T, D)   full sequence, batch-first
                      wih1_ref,    # (D, 3H)     layer-0 input weights, cols [r|z|n]
                      wh_ref,      # (3, H, 3H)  [Whh_l0, Wih_l1, Whh_l1], cols [r|z|n]
                      misc_ref,    # (4, 3H)     biases + LayerNorm params (see pack_params)
                      out_ref):    # (B, H)
    B, T, D = x_ref.shape
    H = out_ref.shape[-1]
    H3 = 3 * H
    f32 = jnp.float32

    # ---- Hoisted, gate-fused layer-0 input projection: one MXU pass ---------
    # (B, T, D) -> (B*T, D): T is a multiple of the 8-sublane tile, so this
    # collapse is layout-trivial.  Bias row 0 already folds b_ih+b_hh for r/z
    # and b_ih for n.
    x2d = x_ref[...].reshape(B * T, D)
    gi1 = (jnp.dot(x2d, wih1_ref[...], preferred_element_type=f32)
           + misc_ref[0:1, :]).reshape(B, T, H3)

    # Fused hidden-path weights (each (H, 3H), gates along lanes).
    whh1 = wh_ref[0]
    wih2 = wh_ref[1]
    whh2 = wh_ref[2]

    b2_ih = misc_ref[1:2, :]            # (1, 3H) layer-1 folded r/z + ih_n bias
    b1_hn = misc_ref[2:3, 0:H]          # (1, H)  layer-0 hh n-gate bias
    b2_hn = misc_ref[2:3, H:2 * H]      # (1, H)  layer-1 hh n-gate bias
    gamma = misc_ref[3:4, 0:H]          # (1, H)
    beta = misc_ref[3:4, H:2 * H]       # (1, H)

    h1 = jnp.zeros((B, H), f32)
    h2 = jnp.zeros((B, H), f32)

    # T is small and static -> fully unrolled recurrence; 3 MXU dots per step.
    for t in range(T):
        # ----- layer 0: input projection precomputed, one fused hidden dot ---
        gi = gi1[:, t]                                          # (B, 3H)
        gh = jnp.dot(h1, whh1, preferred_element_type=f32)      # (B, 3H)
        r1 = jax.nn.sigmoid(gi[:, :H] + gh[:, :H])
        z1 = jax.nn.sigmoid(gi[:, H:2 * H] + gh[:, H:2 * H])
        n1 = jnp.tanh(gi[:, 2 * H:] + r1 * (gh[:, 2 * H:] + b1_hn))
        h1 = (1.0 - z1) * n1 + z1 * h1

        # ----- layer 1: two fused dots ----------------------------------------
        a = jnp.dot(h1, wih2, preferred_element_type=f32) + b2_ih   # (B, 3H)
        g = jnp.dot(h2, whh2, preferred_element_type=f32)           # (B, 3H)
        r2 = jax.nn.sigmoid(a[:, :H] + g[:, :H])
        z2 = jax.nn.sigmoid(a[:, H:2 * H] + g[:, H:2 * H])
        n2 = jnp.tanh(a[:, 2 * H:] + r2 * (g[:, 2 * H:] + b2_hn))
        h2 = (1.0 - z2) * n2 + z2 * h2

    # ---- Fused LayerNorm of the last hidden state (eps=1e-6 as in module) ---
    mean = jnp.mean(h2, axis=-1, keepdims=True)
    var = jnp.mean((h2 - mean) ** 2, axis=-1, keepdims=True)   # biased, like nn.LayerNorm
    normed = (h2 - mean) * jax.lax.rsqrt(var + 1e-6)
    out_ref[...] = normed * gamma + beta


# ------------------------------- Wrapper --------------------------------------
@jax.jit
def enc_lstm_forward(x, params):
    """x: (B, T, D) float32 (batch_first, like the PyTorch module) -> (B, H) float32."""
    B, T, D = x.shape
    H = params["misc"].shape[-1] // 3

    vmem = pl.BlockSpec(memory_space=pltpu.MemorySpace.VMEM)  # whole array in VMEM
    return pl.pallas_call(
        enc_gru_ln_kernel,
        out_shape=jax.ShapeDtypeStruct((B, H), jnp.float32),
        in_specs=[vmem] * 4,
        out_specs=vmem,
    )(x, params["wih1"], params["wh"], params["misc"])


# --------------------- Deterministic parameter construction -------------------
def init_torch_style_params(key, in_dim, hidden_dim):
    """PyTorch-style GRU parameters: U(-1/sqrt(H), 1/sqrt(H)); LayerNorm gamma=1, beta=0."""
    H = hidden_dim
    bound = 1.0 / float(H) ** 0.5
    ks = jax.random.split(key, 8)
    u = lambda k, shape: jax.random.uniform(k, shape, jnp.float32, -bound, bound)
    return {
        "weight_ih_l0": u(ks[0], (3 * H, in_dim)),   # rows [W_ir; W_iz; W_in]
        "weight_hh_l0": u(ks[1], (3 * H, H)),
        "bias_ih_l0":   u(ks[2], (3 * H,)),
        "bias_hh_l0":   u(ks[3], (3 * H,)),
        "weight_ih_l1": u(ks[4], (3 * H, H)),
        "weight_hh_l1": u(ks[5], (3 * H, H)),
        "bias_ih_l1":   u(ks[6], (3 * H,)),
        "bias_hh_l1":   u(ks[7], (3 * H,)),
        "ln_gamma":     jnp.ones((H,), jnp.float32),
        "ln_beta":      jnp.zeros((H,), jnp.float32),
    }


def pack_params(p, hidden_dim):
    """Repack PyTorch-layout params into the kernel's gate-fused layout.

    Weight (3H, in) with rows [W_r; W_z; W_n] -> transpose to (in, 3H): the
    column blocks are exactly [r | z | n], so `x @ w.T` gives gate-fused
    activations directly.
    """
    H = hidden_dim
    zeros_h = jnp.zeros((H,), jnp.float32)

    def fold_bias(bih, bhh):  # -> (3H,): [b_r(ih+hh) | b_z(ih+hh) | b_ih_n]
        return jnp.concatenate(
            [bih[:H] + bhh[:H], bih[H:2 * H] + bhh[H:2 * H], bih[2 * H:]])

    misc = jnp.stack([
        fold_bias(p["bias_ih_l0"], p["bias_hh_l0"]),                       # row 0
        fold_bias(p["bias_ih_l1"], p["bias_hh_l1"]),                       # row 1
        jnp.concatenate([p["bias_hh_l0"][2 * H:],                          # row 2
                         p["bias_hh_l1"][2 * H:], zeros_h]),
        jnp.concatenate([p["ln_gamma"], p["ln_beta"], zeros_h]),           # row 3
    ])

    return {
        "wih1": p["weight_ih_l0"].T,                         # (D, 3H)
        "wh": jnp.stack([p["weight_hh_l0"].T,                # (3, H, 3H)
                         p["weight_ih_l1"].T,
                         p["weight_hh_l1"].T]),
        "misc": misc,                                        # (4, 3H)
    }


# ----------------------------- Pure-JAX reference -----------------------------
def enc_lstm_ref(x, p):
    """Reference built directly from the PyTorch-layout parameters."""
    B, T, D = x.shape
    H = p["ln_gamma"].shape[0]

    def cell(inp, h, w_ih, w_hh, b_ih, b_hh):
        gi = inp @ w_ih.T + b_ih
        gh = h @ w_hh.T + b_hh
        r = jax.nn.sigmoid(gi[:, :H] + gh[:, :H])
        z = jax.nn.sigmoid(gi[:, H:2 * H] + gh[:, H:2 * H])
        n = jnp.tanh(gi[:, 2 * H:] + r * gh[:, 2 * H:])
        return (1.0 - z) * n + z * h

    h1 = jnp.zeros((B, H), jnp.float32)
    h2 = jnp.zeros((B, H), jnp.float32)
    for t in range(T):
        h1 = cell(x[:, t], h1, p["weight_ih_l0"], p["weight_hh_l0"],
                  p["bias_ih_l0"], p["bias_hh_l0"])
        h2 = cell(h1, h2, p["weight_ih_l1"], p["weight_hh_l1"],
                  p["bias_ih_l1"], p["bias_hh_l1"])
    mean = jnp.mean(h2, axis=-1, keepdims=True)
    var = jnp.mean((h2 - mean) ** 2, axis=-1, keepdims=True)
    normed = (h2 - mean) / jnp.sqrt(var + 1e-6)
    return normed * p["ln_gamma"] + p["ln_beta"]


# ---------------------------------- Main ---------------------------------------
if __name__ == "__main__":
    B, T, D, H = 2, 8, 32, 32  # batch, seq, in_feature_dim, hidden_dim

    key = jax.random.PRNGKey(0)
    k_x, k_p = jax.random.split(key)
    x = jax.random.normal(k_x, (B, T, D), jnp.float32)

    torch_params = init_torch_style_params(k_p, D, H)
    params = pack_params(torch_params, H)

    out = jax.block_until_ready(enc_lstm_forward(x, params))
    ref = enc_lstm_ref(x, torch_params)

    assert out.shape == (B, H)
    assert jnp.allclose(out, ref, atol=1e-4, rtol=1e-4), (
        f"max abs err = {jnp.max(jnp.abs(out - ref))}")

    print("KERNEL_OK")
</pallas_src>

<mosaic_0001>
module attributes {stable_mosaic.version = 11 : i64} {
  func.func @enc_gru_ln_kernel(%arg0: memref<2x8x32xf32, #tpu.memory_space<vmem>>, %arg1: memref<32x96xf32, #tpu.memory_space<vmem>>, %arg2: memref<3x32x96xf32, #tpu.memory_space<vmem>>, %arg3: memref<4x96xf32, #tpu.memory_space<vmem>>, %arg4: memref<2x32xf32, #tpu.memory_space<vmem>>) attributes {dimension_semantics = [], scalar_prefetch = 0 : i64, scratch_operands = 0 : i64, tpu.core_type = #tpu.core_type<tc>} {
    %c0 = arith.constant 0 : index
    %c0_0 = arith.constant 0 : index
    %c0_1 = arith.constant 0 : index
    %0 = vector.load %arg0[%c0, %c0_0, %c0_1] : memref<2x8x32xf32, #tpu.memory_space<vmem>>, vector<2x8x32xf32>
    %1 = vector.shape_cast %0 : vector<2x8x32xf32> to vector<16x32xf32>
    %c0_2 = arith.constant 0 : index
    %c0_3 = arith.constant 0 : index
    %2 = vector.load %arg1[%c0_2, %c0_3] : memref<32x96xf32, #tpu.memory_space<vmem>>, vector<32x96xf32>
    %cst = arith.constant dense<0.000000e+00> : vector<16x96xf32>
    %3 = tpu.matmul %1, %2, %cst {dimension_numbers = #tpu.dot_dimension_numbers<[1], [0], [0], [1], [0, 0, 1, 1], [], []>} : vector<16x32xf32>, vector<32x96xf32>, vector<16x96xf32> -> vector<16x96xf32>
    %c0_4 = arith.constant 0 : index
    %c0_5 = arith.constant 0 : index
    %4 = vector.load %arg3[%c0_4, %c0_5] : memref<4x96xf32, #tpu.memory_space<vmem>>, vector<1x96xf32>
    %5 = vector.broadcast %4 : vector<1x96xf32> to vector<16x96xf32>
    %6 = arith.addf %3, %5 : vector<16x96xf32>
    %7 = vector.shape_cast %6 : vector<16x96xf32> to vector<2x8x96xf32>
    %c0_6 = arith.constant 0 : index
    %c0_7 = arith.constant 0 : index
    %c0_8 = arith.constant 0 : index
    %8 = vector.load %arg2[%c0_6, %c0_7, %c0_8] : memref<3x32x96xf32, #tpu.memory_space<vmem>>, vector<1x32x96xf32>
    %9 = vector.shape_cast %8 : vector<1x32x96xf32> to vector<32x96xf32>
    %c1 = arith.constant 1 : index
    %c0_9 = arith.constant 0 : index
    %c0_10 = arith.constant 0 : index
    %10 = vector.load %arg2[%c1, %c0_9, %c0_10] : memref<3x32x96xf32, #tpu.memory_space<vmem>>, vector<1x32x96xf32>
    %11 = vector.shape_cast %10 : vector<1x32x96xf32> to vector<32x96xf32>
    %c2 = arith.constant 2 : index
    %c0_11 = arith.constant 0 : index
    %c0_12 = arith.constant 0 : index
    %12 = vector.load %arg2[%c2, %c0_11, %c0_12] : memref<3x32x96xf32, #tpu.memory_space<vmem>>, vector<1x32x96xf32>
    %13 = vector.shape_cast %12 : vector<1x32x96xf32> to vector<32x96xf32>
    %c1_13 = arith.constant 1 : index
    %c0_14 = arith.constant 0 : index
    %14 = vector.load %arg3[%c1_13, %c0_14] : memref<4x96xf32, #tpu.memory_space<vmem>>, vector<1x96xf32>
    %c2_15 = arith.constant 2 : index
    %c0_16 = arith.constant 0 : index
    %15 = vector.load %arg3[%c2_15, %c0_16] : memref<4x96xf32, #tpu.memory_space<vmem>>, vector<1x32xf32>
    %c2_17 = arith.constant 2 : index
    %c32 = arith.constant 32 : index
    %16 = vector.load %arg3[%c2_17, %c32] : memref<4x96xf32, #tpu.memory_space<vmem>>, vector<1x32xf32>
    %c3 = arith.constant 3 : index
    %c0_18 = arith.constant 0 : index
    %17 = vector.load %arg3[%c3, %c0_18] : memref<4x96xf32, #tpu.memory_space<vmem>>, vector<1x32xf32>
    %c3_19 = arith.constant 3 : index
    %c32_20 = arith.constant 32 : index
    %18 = vector.load %arg3[%c3_19, %c32_20] : memref<4x96xf32, #tpu.memory_space<vmem>>, vector<1x32xf32>
    %cst_21 = arith.constant 0.000000e+00 : f32
    %19 = vector.broadcast %cst_21 : f32 to vector<2x32xf32>
    %cst_22 = arith.constant 0.000000e+00 : f32
    %20 = vector.broadcast %cst_22 : f32 to vector<2x32xf32>
    %21 = vector.extract_strided_slice %7 {offsets = [0, 0, 0], sizes = [2, 1, 96], strides = [1, 1, 1]} : vector<2x8x96xf32> to vector<2x1x96xf32>
    %22 = vector.shape_cast %21 : vector<2x1x96xf32> to vector<2x96xf32>
    %cst_23 = arith.constant dense<0.000000e+00> : vector<2x96xf32>
    %23 = tpu.matmul %19, %9, %cst_23 {dimension_numbers = #tpu.dot_dimension_numbers<[1], [0], [0], [1], [0, 0, 1, 1], [], []>} : vector<2x32xf32>, vector<32x96xf32>, vector<2x96xf32> -> vector<2x96xf32>
    %24 = vector.extract_strided_slice %22 {offsets = [0, 0], sizes = [2, 32], strides = [1, 1]} : vector<2x96xf32> to vector<2x32xf32>
    %25 = vector.extract_strided_slice %23 {offsets = [0, 0], sizes = [2, 32], strides = [1, 1]} : vector<2x96xf32> to vector<2x32xf32>
    %26 = arith.addf %24, %25 : vector<2x32xf32>
    %27 = arith.negf %26 : vector<2x32xf32>
    %28 = math.exp %27 : vector<2x32xf32>
    %cst_24 = arith.constant 1.000000e+00 : f32
    %29 = vector.broadcast %cst_24 : f32 to vector<2x32xf32>
    %30 = arith.addf %29, %28 : vector<2x32xf32>
    %31 = arith.divf %29, %30 : vector<2x32xf32>
    %32 = vector.extract_strided_slice %22 {offsets = [0, 32], sizes = [2, 32], strides = [1, 1]} : vector<2x96xf32> to vector<2x32xf32>
    %33 = vector.extract_strided_slice %23 {offsets = [0, 32], sizes = [2, 32], strides = [1, 1]} : vector<2x96xf32> to vector<2x32xf32>
    %34 = arith.addf %32, %33 : vector<2x32xf32>
    %35 = arith.negf %34 : vector<2x32xf32>
    %36 = math.exp %35 : vector<2x32xf32>
    %cst_25 = arith.constant 1.000000e+00 : f32
    %37 = vector.broadcast %cst_25 : f32 to vector<2x32xf32>
    %38 = arith.addf %37, %36 : vector<2x32xf32>
    %39 = arith.divf %37, %38 : vector<2x32xf32>
    %40 = vector.extract_strided_slice %22 {offsets = [0, 64], sizes = [2, 32], strides = [1, 1]} : vector<2x96xf32> to vector<2x32xf32>
    %41 = vector.extract_strided_slice %23 {offsets = [0, 64], sizes = [2, 32], strides = [1, 1]} : vector<2x96xf32> to vector<2x32xf32>
    %42 = vector.broadcast %15 : vector<1x32xf32> to vector<2x32xf32>
    %43 = arith.addf %41, %42 : vector<2x32xf32>
    %44 = arith.mulf %31, %43 : vector<2x32xf32>
    %45 = arith.addf %40, %44 : vector<2x32xf32>
    %46 = math.tanh %45 : vector<2x32xf32>
    %cst_26 = arith.constant 1.000000e+00 : f32
    %47 = vector.broadcast %cst_26 : f32 to vector<2x32xf32>
    %48 = arith.subf %47, %39 : vector<2x32xf32>
    %49 = arith.mulf %48, %46 : vector<2x32xf32>
    %50 = arith.mulf %39, %19 : vector<2x32xf32>
    %51 = arith.addf %49, %50 : vector<2x32xf32>
    %cst_27 = arith.constant dense<0.000000e+00> : vector<2x96xf32>
    %52 = tpu.matmul %51, %11, %cst_27 {dimension_numbers = #tpu.dot_dimension_numbers<[1], [0], [0], [1], [0, 0, 1, 1], [], []>} : vector<2x32xf32>, vector<32x96xf32>, vector<2x96xf32> -> vector<2x96xf32>
    %53 = vector.broadcast %14 : vector<1x96xf32> to vector<2x96xf32>
    %54 = arith.addf %52, %53 : vector<2x96xf32>
    %cst_28 = arith.constant dense<0.000000e+00> : vector<2x96xf32>
    %55 = tpu.matmul %20, %13, %cst_28 {dimension_numbers = #tpu.dot_dimension_numbers<[1], [0], [0], [1], [0, 0, 1, 1], [], []>} : vector<2x32xf32>, vector<32x96xf32>, vector<2x96xf32> -> vector<2x96xf32>
    %56 = vector.extract_strided_slice %54 {offsets = [0, 0], sizes = [2, 32], strides = [1, 1]} : vector<2x96xf32> to vector<2x32xf32>
    %57 = vector.extract_strided_slice %55 {offsets = [0, 0], sizes = [2, 32], strides = [1, 1]} : vector<2x96xf32> to vector<2x32xf32>
    %58 = arith.addf %56, %57 : vector<2x32xf32>
    %59 = arith.negf %58 : vector<2x32xf32>
    %60 = math.exp %59 : vector<2x32xf32>
    %cst_29 = arith.constant 1.000000e+00 : f32
    %61 = vector.broadcast %cst_29 : f32 to vector<2x32xf32>
    %62 = arith.addf %61, %60 : vector<2x32xf32>
    %63 = arith.divf %61, %62 : vector<2x32xf32>
    %64 = vector.extract_strided_slice %54 {offsets = [0, 32], sizes = [2, 32], strides = [1, 1]} : vector<2x96xf32> to vector<2x32xf32>
    %65 = vector.extract_strided_slice %55 {offsets = [0, 32], sizes = [2, 32], strides = [1, 1]} : vector<2x96xf32> to vector<2x32xf32>
    %66 = arith.addf %64, %65 : vector<2x32xf32>
    %67 = arith.negf %66 : vector<2x32xf32>
    %68 = math.exp %67 : vector<2x32xf32>
    %cst_30 = arith.constant 1.000000e+00 : f32
    %69 = vector.broadcast %cst_30 : f32 to vector<2x32xf32>
    %70 = arith.addf %69, %68 : vector<2x32xf32>
    %71 = arith.divf %69, %70 : vector<2x32xf32>
    %72 = vector.extract_strided_slice %54 {offsets = [0, 64], sizes = [2, 32], strides = [1, 1]} : vector<2x96xf32> to vector<2x32xf32>
    %73 = vector.extract_strided_slice %55 {offsets = [0, 64], sizes = [2, 32], strides = [1, 1]} : vector<2x96xf32> to vector<2x32xf32>
    %74 = vector.broadcast %16 : vector<1x32xf32> to vector<2x32xf32>
    %75 = arith.addf %73, %74 : vector<2x32xf32>
    %76 = arith.mulf %63, %75 : vector<2x32xf32>
    %77 = arith.addf %72, %76 : vector<2x32xf32>
    %78 = math.tanh %77 : vector<2x32xf32>
    %cst_31 = arith.constant 1.000000e+00 : f32
    %79 = vector.broadcast %cst_31 : f32 to vector<2x32xf32>
    %80 = arith.subf %79, %71 : vector<2x32xf32>
    %81 = arith.mulf %80, %78 : vector<2x32xf32>
    %82 = arith.mulf %71, %20 : vector<2x32xf32>
    %83 = arith.addf %81, %82 : vector<2x32xf32>
    %84 = vector.extract_strided_slice %7 {offsets = [0, 1, 0], sizes = [2, 1, 96], strides = [1, 1, 1]} : vector<2x8x96xf32> to vector<2x1x96xf32>
    %85 = vector.shape_cast %84 : vector<2x1x96xf32> to vector<2x96xf32>
    %cst_32 = arith.constant dense<0.000000e+00> : vector<2x96xf32>
    %86 = tpu.matmul %51, %9, %cst_32 {dimension_numbers = #tpu.dot_dimension_numbers<[1], [0], [0], [1], [0, 0, 1, 1], [], []>} : vector<2x32xf32>, vector<32x96xf32>, vector<2x96xf32> -> vector<2x96xf32>
    %87 = vector.extract_strided_slice %85 {offsets = [0, 0], sizes = [2, 32], strides = [1, 1]} : vector<2x96xf32> to vector<2x32xf32>
    %88 = vector.extract_strided_slice %86 {offsets = [0, 0], sizes = [2, 32], strides = [1, 1]} : vector<2x96xf32> to vector<2x32xf32>
    %89 = arith.addf %87, %88 : vector<2x32xf32>
    %90 = arith.negf %89 : vector<2x32xf32>
    %91 = math.exp %90 : vector<2x32xf32>
    %cst_33 = arith.constant 1.000000e+00 : f32
    %92 = vector.broadcast %cst_33 : f32 to vector<2x32xf32>
    %93 = arith.addf %92, %91 : vector<2x32xf32>
    %94 = arith.divf %92, %93 : vector<2x32xf32>
    %95 = vector.extract_strided_slice %85 {offsets = [0, 32], sizes = [2, 32], strides = [1, 1]} : vector<2x96xf32> to vector<2x32xf32>
    %96 = vector.extract_strided_slice %86 {offsets = [0, 32], sizes = [2, 32], strides = [1, 1]} : vector<2x96xf32> to vector<2x32xf32>
    %97 = arith.addf %95, %96 : vector<2x32xf32>
    %98 = arith.negf %97 : vector<2x32xf32>
    %99 = math.exp %98 : vector<2x32xf32>
    %cst_34 = arith.constant 1.000000e+00 : f32
    %100 = vector.broadcast %cst_34 : f32 to vector<2x32xf32>
    %101 = arith.addf %100, %99 : vector<2x32xf32>
    %102 = arith.divf %100, %101 : vector<2x32xf32>
    %103 = vector.extract_strided_slice %85 {offsets = [0, 64], sizes = [2, 32], strides = [1, 1]} : vector<2x96xf32> to vector<2x32xf32>
    %104 = vector.extract_strided_slice %86 {offsets = [0, 64], sizes = [2, 32], strides = [1, 1]} : vector<2x96xf32> to vector<2x32xf32>
    %105 = vector.broadcast %15 : vector<1x32xf32> to vector<2x32xf32>
    %106 = arith.addf %104, %105 : vector<2x32xf32>
    %107 = arith.mulf %94, %106 : vector<2x32xf32>
    %108 = arith.addf %103, %107 : vector<2x32xf32>
    %109 = math.tanh %108 : vector<2x32xf32>
    %cst_35 = arith.constant 1.000000e+00 : f32
    %110 = vector.broadcast %cst_35 : f32 to vector<2x32xf32>
    %111 = arith.subf %110, %102 : vector<2x32xf32>
    %112 = arith.mulf %111, %109 : vector<2x32xf32>
    %113 = arith.mulf %102, %51 : vector<2x32xf32>
    %114 = arith.addf %112, %113 : vector<2x32xf32>
    %cst_36 = arith.constant dense<0.000000e+00> : vector<2x96xf32>
    %115 = tpu.matmul %114, %11, %cst_36 {dimension_numbers = #tpu.dot_dimension_numbers<[1], [0], [0], [1], [0, 0, 1, 1], [], []>} : vector<2x32xf32>, vector<32x96xf32>, vector<2x96xf32> -> vector<2x96xf32>
    %116 = vector.broadcast %14 : vector<1x96xf32> to vector<2x96xf32>
    %117 = arith.addf %115, %116 : vector<2x96xf32>
    %cst_37 = arith.constant dense<0.000000e+00> : vector<2x96xf32>
    %118 = tpu.matmul %83, %13, %cst_37 {dimension_numbers = #tpu.dot_dimension_numbers<[1], [0], [0], [1], [0, 0, 1, 1], [], []>} : vector<2x32xf32>, vector<32x96xf32>, vector<2x96xf32> -> vector<2x96xf32>
    %119 = vector.extract_strided_slice %117 {offsets = [0, 0], sizes = [2, 32], strides = [1, 1]} : vector<2x96xf32> to vector<2x32xf32>
    %120 = vector.extract_strided_slice %118 {offsets = [0, 0], sizes = [2, 32], strides = [1, 1]} : vector<2x96xf32> to vector<2x32xf32>
    %121 = arith.addf %119, %120 : vector<2x32xf32>
    %122 = arith.negf %121 : vector<2x32xf32>
    %123 = math.exp %122 : vector<2x32xf32>
    %cst_38 = arith.constant 1.000000e+00 : f32
    %124 = vector.broadcast %cst_38 : f32 to vector<2x32xf32>
    %125 = arith.addf %124, %123 : vector<2x32xf32>
    %126 = arith.divf %124, %125 : vector<2x32xf32>
    %127 = vector.extract_strided_slice %117 {offsets = [0, 32], sizes = [2, 32], strides = [1, 1]} : vector<2x96xf32> to vector<2x32xf32>
    %128 = vector.extract_strided_slice %118 {offsets = [0, 32], sizes = [2, 32], strides = [1, 1]} : vector<2x96xf32> to vector<2x32xf32>
    %129 = arith.addf %127, %128 : vector<2x32xf32>
    %130 = arith.negf %129 : vector<2x32xf32>
    %131 = math.exp %130 : vector<2x32xf32>
    %cst_39 = arith.constant 1.000000e+00 : f32
    %132 = vector.broadcast %cst_39 : f32 to vector<2x32xf32>
    %133 = arith.addf %132, %131 : vector<2x32xf32>
    %134 = arith.divf %132, %133 : vector<2x32xf32>
    %135 = vector.extract_strided_slice %117 {offsets = [0, 64], sizes = [2, 32], strides = [1, 1]} : vector<2x96xf32> to vector<2x32xf32>
    %136 = vector.extract_strided_slice %118 {offsets = [0, 64], sizes = [2, 32], strides = [1, 1]} : vector<2x96xf32> to vector<2x32xf32>
    %137 = vector.broadcast %16 : vector<1x32xf32> to vector<2x32xf32>
    %138 = arith.addf %136, %137 : vector<2x32xf32>
    %139 = arith.mulf %126, %138 : vector<2x32xf32>
    %140 = arith.addf %135, %139 : vector<2x32xf32>
    %141 = math.tanh %140 : vector<2x32xf32>
    %cst_40 = arith.constant 1.000000e+00 : f32
    %142 = vector.broadcast %cst_40 : f32 to vector<2x32xf32>
    %143 = arith.subf %142, %134 : vector<2x32xf32>
    %144 = arith.mulf %143, %141 : vector<2x32xf32>
    %145 = arith.mulf %134, %83 : vector<2x32xf32>
    %146 = arith.addf %144, %145 : vector<2x32xf32>
    %147 = vector.extract_strided_slice %7 {offsets = [0, 2, 0], sizes = [2, 1, 96], strides = [1, 1, 1]} : vector<2x8x96xf32> to vector<2x1x96xf32>
    %148 = vector.shape_cast %147 : vector<2x1x96xf32> to vector<2x96xf32>
    %cst_41 = arith.constant dense<0.000000e+00> : vector<2x96xf32>
    %149 = tpu.matmul %114, %9, %cst_41 {dimension_numbers = #tpu.dot_dimension_numbers<[1], [0], [0], [1], [0, 0, 1, 1], [], []>} : vector<2x32xf32>, vector<32x96xf32>, vector<2x96xf32> -> vector<2x96xf32>
    %150 = vector.extract_strided_slice %148 {offsets = [0, 0], sizes = [2, 32], strides = [1, 1]} : vector<2x96xf32> to vector<2x32xf32>
    %151 = vector.extract_strided_slice %149 {offsets = [0, 0], sizes = [2, 32], strides = [1, 1]} : vector<2x96xf32> to vector<2x32xf32>
    %152 = arith.addf %150, %151 : vector<2x32xf32>
    %153 = arith.negf %152 : vector<2x32xf32>
    %154 = math.exp %153 : vector<2x32xf32>
    %cst_42 = arith.constant 1.000000e+00 : f32
    %155 = vector.broadcast %cst_42 : f32 to vector<2x32xf32>
    %156 = arith.addf %155, %154 : vector<2x32xf32>
    %157 = arith.divf %155, %156 : vector<2x32xf32>
    %158 = vector.extract_strided_slice %148 {offsets = [0, 32], sizes = [2, 32], strides = [1, 1]} : vector<2x96xf32> to vector<2x32xf32>
    %159 = vector.extract_strided_slice %149 {offsets = [0, 32], sizes = [2, 32], strides = [1, 1]} : vector<2x96xf32> to vector<2x32xf32>
    %160 = arith.addf %158, %159 : vector<2x32xf32>
    %161 = arith.negf %160 : vector<2x32xf32>
    %162 = math.exp %161 : vector<2x32xf32>
    %cst_43 = arith.constant 1.000000e+00 : f32
    %163 = vector.broadcast %cst_43 : f32 to vector<2x32xf32>
    %164 = arith.addf %163, %162 : vector<2x32xf32>
    %165 = arith.divf %163, %164 : vector<2x32xf32>
    %166 = vector.extract_strided_slice %148 {offsets = [0, 64], sizes = [2, 32], strides = [1, 1]} : vector<2x96xf32> to vector<2x32xf32>
    %167 = vector.extract_strided_slice %149 {offsets = [0, 64], sizes = [2, 32], strides = [1, 1]} : vector<2x96xf32> to vector<2x32xf32>
    %168 = vector.broadcast %15 : vector<1x32xf32> to vector<2x32xf32>
    %169 = arith.addf %167, %168 : vector<2x32xf32>
    %170 = arith.mulf %157, %169 : vector<2x32xf32>
    %171 = arith.addf %166, %170 : vector<2x32xf32>
    %172 = math.tanh %171 : vector<2x32xf32>
    %cst_44 = arith.constant 1.000000e+00 : f32
    %173 = vector.broadcast %cst_44 : f32 to vector<2x32xf32>
    %174 = arith.subf %173, %165 : vector<2x32xf32>
    %175 = arith.mulf %174, %172 : vector<2x32xf32>
    %176 = arith.mulf %165, %114 : vector<2x32xf32>
    %177 = arith.addf %175, %176 : vector<2x32xf32>
    %cst_45 = arith.constant dense<0.000000e+00> : vector<2x96xf32>
    %178 = tpu.matmul %177, %11, %cst_45 {dimension_numbers = #tpu.dot_dimension_numbers<[1], [0], [0], [1], [0, 0, 1, 1], [], []>} : vector<2x32xf32>, vector<32x96xf32>, vector<2x96xf32> -> vector<2x96xf32>
    %179 = vector.broadcast %14 : vector<1x96xf32> to vector<2x96xf32>
    %180 = arith.addf %178, %179 : vector<2x96xf32>
    %cst_46 = arith.constant dense<0.000000e+00> : vector<2x96xf32>
    %181 = tpu.matmul %146, %13, %cst_46 {dimension_numbers = #tpu.dot_dimension_numbers<[1], [0], [0], [1], [0, 0, 1, 1], [], []>} : vector<2x32xf32>, vector<32x96xf32>, vector<2x96xf32> -> vector<2x96xf32>
    %182 = vector.extract_strided_slice %180 {offsets = [0, 0], sizes = [2, 32], strides = [1, 1]} : vector<2x96xf32> to vector<2x32xf32>
    %183 = vector.extract_strided_slice %181 {offsets = [0, 0], sizes = [2, 32], strides = [1, 1]} : vector<2x96xf32> to vector<2x32xf32>
    %184 = arith.addf %182, %183 : vector<2x32xf32>
    %185 = arith.negf %184 : vector<2x32xf32>
    %186 = math.exp %185 : vector<2x32xf32>
    %cst_47 = arith.constant 1.000000e+00 : f32
    %187 = vector.broadcast %cst_47 : f32 to vector<2x32xf32>
    %188 = arith.addf %187, %186 : vector<2x32xf32>
    %189 = arith.divf %187, %188 : vector<2x32xf32>
    %190 = vector.extract_strided_slice %180 {offsets = [0, 32], sizes = [2, 32], strides = [1, 1]} : vector<2x96xf32> to vector<2x32xf32>
    %191 = vector.extract_strided_slice %181 {offsets = [0, 32], sizes = [2, 32], strides = [1, 1]} : vector<2x96xf32> to vector<2x32xf32>
    %192 = arith.addf %190, %191 : vector<2x32xf32>
    %193 = arith.negf %192 : vector<2x32xf32>
    %194 = math.exp %193 : vector<2x32xf32>
    %cst_48 = arith.constant 1.000000e+00 : f32
    %195 = vector.broadcast %cst_48 : f32 to vector<2x32xf32>
    %196 = arith.addf %195, %194 : vector<2x32xf32>
    %197 = arith.divf %195, %196 : vector<2x32xf32>
    %198 = vector.extract_strided_slice %180 {offsets = [0, 64], sizes = [2, 32], strides = [1, 1]} : vector<2x96xf32> to vector<2x32xf32>
    %199 = vector.extract_strided_slice %181 {offsets = [0, 64], sizes = [2, 32], strides = [1, 1]} : vector<2x96xf32> to vector<2x32xf32>
    %200 = vector.broadcast %16 : vector<1x32xf32> to vector<2x32xf32>
    %201 = arith.addf %199, %200 : vector<2x32xf32>
    %202 = arith.mulf %189, %201 : vector<2x32xf32>
    %203 = arith.addf %198, %202 : vector<2x32xf32>
    %204 = math.tanh %203 : vector<2x32xf32>
    %cst_49 = arith.constant 1.000000e+00 : f32
    %205 = vector.broadcast %cst_49 : f32 to vector<2x32xf32>
    %206 = arith.subf %205, %197 : vector<2x32xf32>
    %207 = arith.mulf %206, %204 : vector<2x32xf32>
    %208 = arith.mulf %197, %146 : vector<2x32xf32>
    %209 = arith.addf %207, %208 : vector<2x32xf32>
    %210 = vector.extract_strided_slice %7 {offsets = [0, 3, 0], sizes = [2, 1, 96], strides = [1, 1, 1]} : vector<2x8x96xf32> to vector<2x1x96xf32>
    %211 = vector.shape_cast %210 : vector<2x1x96xf32> to vector<2x96xf32>
    %cst_50 = arith.constant dense<0.000000e+00> : vector<2x96xf32>
    %212 = tpu.matmul %177, %9, %cst_50 {dimension_numbers = #tpu.dot_dimension_numbers<[1], [0], [0], [1], [0, 0, 1, 1], [], []>} : vector<2x32xf32>, vector<32x96xf32>, vector<2x96xf32> -> vector<2x96xf32>
    %213 = vector.extract_strided_slice %211 {offsets = [0, 0], sizes = [2, 32], strides = [1, 1]} : vector<2x96xf32> to vector<2x32xf32>
    %214 = vector.extract_strided_slice %212 {offsets = [0, 0], sizes = [2, 32], strides = [1, 1]} : vector<2x96xf32> to vector<2x32xf32>
    %215 = arith.addf %213, %214 : vector<2x32xf32>
    %216 = arith.negf %215 : vector<2x32xf32>
    %217 = math.exp %216 : vector<2x32xf32>
    %cst_51 = arith.constant 1.000000e+00 : f32
    %218 = vector.broadcast %cst_51 : f32 to vector<2x32xf32>
    %219 = arith.addf %218, %217 : vector<2x32xf32>
    %220 = arith.divf %218, %219 : vector<2x32xf32>
    %221 = vector.extract_strided_slice %211 {offsets = [0, 32], sizes = [2, 32], strides = [1, 1]} : vector<2x96xf32> to vector<2x32xf32>
    %222 = vector.extract_strided_slice %212 {offsets = [0, 32], sizes = [2, 32], strides = [1, 1]} : vector<2x96xf32> to vector<2x32xf32>
    %223 = arith.addf %221, %222 : vector<2x32xf32>
    %224 = arith.negf %223 : vector<2x32xf32>
    %225 = math.exp %224 : vector<2x32xf32>
    %cst_52 = arith.constant 1.000000e+00 : f32
    %226 = vector.broadcast %cst_52 : f32 to vector<2x32xf32>
    %227 = arith.addf %226, %225 : vector<2x32xf32>
    %228 = arith.divf %226, %227 : vector<2x32xf32>
    %229 = vector.extract_strided_slice %211 {offsets = [0, 64], sizes = [2, 32], strides = [1, 1]} : vector<2x96xf32> to vector<2x32xf32>
    %230 = vector.extract_strided_slice %212 {offsets = [0, 64], sizes = [2, 32], strides = [1, 1]} : vector<2x96xf32> to vector<2x32xf32>
    %231 = vector.broadcast %15 : vector<1x32xf32> to vector<2x32xf32>
    %232 = arith.addf %230, %231 : vector<2x32xf32>
    %233 = arith.mulf %220, %232 : vector<2x32xf32>
    %234 = arith.addf %229, %233 : vector<2x32xf32>
    %235 = math.tanh %234 : vector<2x32xf32>
    %cst_53 = arith.constant 1.000000e+00 : f32
    %236 = vector.broadcast %cst_53 : f32 to vector<2x32xf32>
    %237 = arith.subf %236, %228 : vector<2x32xf32>
    %238 = arith.mulf %237, %235 : vector<2x32xf32>
    %239 = arith.mulf %228, %177 : vector<2x32xf32>
    %240 = arith.addf %238, %239 : vector<2x32xf32>
    %cst_54 = arith.constant dense<0.000000e+00> : vector<2x96xf32>
    %241 = tpu.matmul %240, %11, %cst_54 {dimension_numbers = #tpu.dot_dimension_numbers<[1], [0], [0], [1], [0, 0, 1, 1], [], []>} : vector<2x32xf32>, vector<32x96xf32>, vector<2x96xf32> -> vector<2x96xf32>
    %242 = vector.broadcast %14 : vector<1x96xf32> to vector<2x96xf32>
    %243 = arith.addf %241, %242 : vector<2x96xf32>
    %cst_55 = arith.constant dense<0.000000e+00> : vector<2x96xf32>
    %244 = tpu.matmul %209, %13, %cst_55 {dimension_numbers = #tpu.dot_dimension_numbers<[1], [0], [0], [1], [0, 0, 1, 1], [], []>} : vector<2x32xf32>, vector<32x96xf32>, vector<2x96xf32> -> vector<2x96xf32>
    %245 = vector.extract_strided_slice %243 {offsets = [0, 0], sizes = [2, 32], strides = [1, 1]} : vector<2x96xf32> to vector<2x32xf32>
    %246 = vector.extract_strided_slice %244 {offsets = [0, 0], sizes = [2, 32], strides = [1, 1]} : vector<2x96xf32> to vector<2x32xf32>
    %247 = arith.addf %245, %246 : vector<2x32xf32>
    %248 = arith.negf %247 : vector<2x32xf32>
    %249 = math.exp %248 : vector<2x32xf32>
    %cst_56 = arith.constant 1.000000e+00 : f32
    %250 = vector.broadcast %cst_56 : f32 to vector<2x32xf32>
    %251 = arith.addf %250, %249 : vector<2x32xf32>
    %252 = arith.divf %250, %251 : vector<2x32xf32>
    %253 = vector.extract_strided_slice %243 {offsets = [0, 32], sizes = [2, 32], strides = [1, 1]} : vector<2x96xf32> to vector<2x32xf32>
    %254 = vector.extract_strided_slice %244 {offsets = [0, 32], sizes = [2, 32], strides = [1, 1]} : vector<2x96xf32> to vector<2x32xf32>
    %255 = arith.addf %253, %254 : vector<2x32xf32>
    %256 = arith.negf %255 : vector<2x32xf32>
    %257 = math.exp %256 : vector<2x32xf32>
    %cst_57 = arith.constant 1.000000e+00 : f32
    %258 = vector.broadcast %cst_57 : f32 to vector<2x32xf32>
    %259 = arith.addf %258, %257 : vector<2x32xf32>
    %260 = arith.divf %258, %259 : vector<2x32xf32>
    %261 = vector.extract_strided_slice %243 {offsets = [0, 64], sizes = [2, 32], strides = [1, 1]} : vector<2x96xf32> to vector<2x32xf32>
    %262 = vector.extract_strided_slice %244 {offsets = [0, 64], sizes = [2, 32], strides = [1, 1]} : vector<2x96xf32> to vector<2x32xf32>
    %263 = vector.broadcast %16 : vector<1x32xf32> to vector<2x32xf32>
    %264 = arith.addf %262, %263 : vector<2x32xf32>
    %265 = arith.mulf %252, %264 : vector<2x32xf32>
    %266 = arith.addf %261, %265 : vector<2x32xf32>
    %267 = math.tanh %266 : vector<2x32xf32>
    %cst_58 = arith.constant 1.000000e+00 : f32
    %268 = vector.broadcast %cst_58 : f32 to vector<2x32xf32>
    %269 = arith.subf %268, %260 : vector<2x32xf32>
    %270 = arith.mulf %269, %267 : vector<2x32xf32>
    %271 = arith.mulf %260, %209 : vector<2x32xf32>
    %272 = arith.addf %270, %271 : vector<2x32xf32>
    %273 = vector.extract_strided_slice %7 {offsets = [0, 4, 0], sizes = [2, 1, 96], strides = [1, 1, 1]} : vector<2x8x96xf32> to vector<2x1x96xf32>
    %274 = vector.shape_cast %273 : vector<2x1x96xf32> to vector<2x96xf32>
    %cst_59 = arith.constant dense<0.000000e+00> : vector<2x96xf32>
    %275 = tpu.matmul %240, %9, %cst_59 {dimension_numbers = #tpu.dot_dimension_numbers<[1], [0], [0], [1], [0, 0, 1, 1], [], []>} : vector<2x32xf32>, vector<32x96xf32>, vector<2x96xf32> -> vector<2x96xf32>
    %276 = vector.extract_strided_slice %274 {offsets = [0, 0], sizes = [2, 32], strides = [1, 1]} : vector<2x96xf32> to vector<2x32xf32>
    %277 = vector.extract_strided_slice %275 {offsets = [0, 0], sizes = [2, 32], strides = [1, 1]} : vector<2x96xf32> to vector<2x32xf32>
    %278 = arith.addf %276, %277 : vector<2x32xf32>
    %279 = arith.negf %278 : vector<2x32xf32>
    %280 = math.exp %279 : vector<2x32xf32>
    %cst_60 = arith.constant 1.000000e+00 : f32
    %281 = vector.broadcast %cst_60 : f32 to vector<2x32xf32>
    %282 = arith.addf %281, %280 : vector<2x32xf32>
    %283 = arith.divf %281, %282 : vector<2x32xf32>
    %284 = vector.extract_strided_slice %274 {offsets = [0, 32], sizes = [2, 32], strides = [1, 1]} : vector<2x96xf32> to vector<2x32xf32>
    %285 = vector.extract_strided_slice %275 {offsets = [0, 32], sizes = [2, 32], strides = [1, 1]} : vector<2x96xf32> to vector<2x32xf32>
    %286 = arith.addf %284, %285 : vector<2x32xf32>
    %287 = arith.negf %286 : vector<2x32xf32>
    %288 = math.exp %287 : vector<2x32xf32>
    %cst_61 = arith.constant 1.000000e+00 : f32
    %289 = vector.broadcast %cst_61 : f32 to vector<2x32xf32>
    %290 = arith.addf %289, %288 : vector<2x32xf32>
    %291 = arith.divf %289, %290 : vector<2x32xf32>
    %292 = vector.extract_strided_slice %274 {offsets = [0, 64], sizes = [2, 32], strides = [1, 1]} : vector<2x96xf32> to vector<2x32xf32>
    %293 = vector.extract_strided_slice %275 {offsets = [0, 64], sizes = [2, 32], strides = [1, 1]} : vector<2x96xf32> to vector<2x32xf32>
    %294 = vector.broadcast %15 : vector<1x32xf32> to vector<2x32xf32>
    %295 = arith.addf %293, %294 : vector<2x32xf32>
    %296 = arith.mulf %283, %295 : vector<2x32xf32>
    %297 = arith.addf %292, %296 : vector<2x32xf32>
    %298 = math.tanh %297 : vector<2x32xf32>
    %cst_62 = arith.constant 1.000000e+00 : f32
    %299 = vector.broadcast %cst_62 : f32 to vector<2x32xf32>
    %300 = arith.subf %299, %291 : vector<2x32xf32>
    %301 = arith.mulf %300, %298 : vector<2x32xf32>
    %302 = arith.mulf %291, %240 : vector<2x32xf32>
    %303 = arith.addf %301, %302 : vector<2x32xf32>
    %cst_63 = arith.constant dense<0.000000e+00> : vector<2x96xf32>
    %304 = tpu.matmul %303, %11, %cst_63 {dimension_numbers = #tpu.dot_dimension_numbers<[1], [0], [0], [1], [0, 0, 1, 1], [], []>} : vector<2x32xf32>, vector<32x96xf32>, vector<2x96xf32> -> vector<2x96xf32>
    %305 = vector.broadcast %14 : vector<1x96xf32> to vector<2x96xf32>
    %306 = arith.addf %304, %305 : vector<2x96xf32>
    %cst_64 = arith.constant dense<0.000000e+00> : vector<2x96xf32>
    %307 = tpu.matmul %272, %13, %cst_64 {dimension_numbers = #tpu.dot_dimension_numbers<[1], [0], [0], [1], [0, 0, 1, 1], [], []>} : vector<2x32xf32>, vector<32x96xf32>, vector<2x96xf32> -> vector<2x96xf32>
    %308 = vector.extract_strided_slice %306 {offsets = [0, 0], sizes = [2, 32], strides = [1, 1]} : vector<2x96xf32> to vector<2x32xf32>
    %309 = vector.extract_strided_slice %307 {offsets = [0, 0], sizes = [2, 32], strides = [1, 1]} : vector<2x96xf32> to vector<2x32xf32>
    %310 = arith.addf %308, %309 : vector<2x32xf32>
    %311 = arith.negf %310 : vector<2x32xf32>
    %312 = math.exp %311 : vector<2x32xf32>
    %cst_65 = arith.constant 1.000000e+00 : f32
    %313 = vector.broadcast %cst_65 : f32 to vector<2x32xf32>
    %314 = arith.addf %313, %312 : vector<2x32xf32>
    %315 = arith.divf %313, %314 : vector<2x32xf32>
    %316 = vector.extract_strided_slice %306 {offsets = [0, 32], sizes = [2, 32], strides = [1, 1]} : vector<2x96xf32> to vector<2x32xf32>
    %317 = vector.extract_strided_slice %307 {offsets = [0, 32], sizes = [2, 32], strides = [1, 1]} : vector<2x96xf32> to vector<2x32xf32>
    %318 = arith.addf %316, %317 : vector<2x32xf32>
    %319 = arith.negf %318 : vector<2x32xf32>
    %320 = math.exp %319 : vector<2x32xf32>
    %cst_66 = arith.constant 1.000000e+00 : f32
    %321 = vector.broadcast %cst_66 : f32 to vector<2x32xf32>
    %322 = arith.addf %321, %320 : vector<2x32xf32>
    %323 = arith.divf %321, %322 : vector<2x32xf32>
    %324 = vector.extract_strided_slice %306 {offsets = [0, 64], sizes = [2, 32], strides = [1, 1]} : vector<2x96xf32> to vector<2x32xf32>
    %325 = vector.extract_strided_slice %307 {offsets = [0, 64], sizes = [2, 32], strides = [1, 1]} : vector<2x96xf32> to vector<2x32xf32>
    %326 = vector.broadcast %16 : vector<1x32xf32> to vector<2x32xf32>
    %327 = arith.addf %325, %326 : vector<2x32xf32>
    %328 = arith.mulf %315, %327 : vector<2x32xf32>
    %329 = arith.addf %324, %328 : vector<2x32xf32>
    %330 = math.tanh %329 : vector<2x32xf32>
    %cst_67 = arith.constant 1.000000e+00 : f32
    %331 = vector.broadcast %cst_67 : f32 to vector<2x32xf32>
    %332 = arith.subf %331, %323 : vector<2x32xf32>
    %333 = arith.mulf %332, %330 : vector<2x32xf32>
    %334 = arith.mulf %323, %272 : vector<2x32xf32>
    %335 = arith.addf %333, %334 : vector<2x32xf32>
    %336 = vector.extract_strided_slice %7 {offsets = [0, 5, 0], sizes = [2, 1, 96], strides = [1, 1, 1]} : vector<2x8x96xf32> to vector<2x1x96xf32>
    %337 = vector.shape_cast %336 : vector<2x1x96xf32> to vector<2x96xf32>
    %cst_68 = arith.constant dense<0.000000e+00> : vector<2x96xf32>
    %338 = tpu.matmul %303, %9, %cst_68 {dimension_numbers = #tpu.dot_dimension_numbers<[1], [0], [0], [1], [0, 0, 1, 1], [], []>} : vector<2x32xf32>, vector<32x96xf32>, vector<2x96xf32> -> vector<2x96xf32>
    %339 = vector.extract_strided_slice %337 {offsets = [0, 0], sizes = [2, 32], strides = [1, 1]} : vector<2x96xf32> to vector<2x32xf32>
    %340 = vector.extract_strided_slice %338 {offsets = [0, 0], sizes = [2, 32], strides = [1, 1]} : vector<2x96xf32> to vector<2x32xf32>
    %341 = arith.addf %339, %340 : vector<2x32xf32>
    %342 = arith.negf %341 : vector<2x32xf32>
    %343 = math.exp %342 : vector<2x32xf32>
    %cst_69 = arith.constant 1.000000e+00 : f32
    %344 = vector.broadcast %cst_69 : f32 to vector<2x32xf32>
    %345 = arith.addf %344, %343 : vector<2x32xf32>
    %346 = arith.divf %344, %345 : vector<2x32xf32>
    %347 = vector.extract_strided_slice %337 {offsets = [0, 32], sizes = [2, 32], strides = [1, 1]} : vector<2x96xf32> to vector<2x32xf32>
    %348 = vector.extract_strided_slice %338 {offsets = [0, 32], sizes = [2, 32], strides = [1, 1]} : vector<2x96xf32> to vector<2x32xf32>
    %349 = arith.addf %347, %348 : vector<2x32xf32>
    %350 = arith.negf %349 : vector<2x32xf32>
    %351 = math.exp %350 : vector<2x32xf32>
    %cst_70 = arith.constant 1.000000e+00 : f32
    %352 = vector.broadcast %cst_70 : f32 to vector<2x32xf32>
    %353 = arith.addf %352, %351 : vector<2x32xf32>
    %354 = arith.divf %352, %353 : vector<2x32xf32>
    %355 = vector.extract_strided_slice %337 {offsets = [0, 64], sizes = [2, 32], strides = [1, 1]} : vector<2x96xf32> to vector<2x32xf32>
    %356 = vector.extract_strided_slice %338 {offsets = [0, 64], sizes = [2, 32], strides = [1, 1]} : vector<2x96xf32> to vector<2x32xf32>
    %357 = vector.broadcast %15 : vector<1x32xf32> to vector<2x32xf32>
    %358 = arith.addf %356, %357 : vector<2x32xf32>
    %359 = arith.mulf %346, %358 : vector<2x32xf32>
    %360 = arith.addf %355, %359 : vector<2x32xf32>
    %361 = math.tanh %360 : vector<2x32xf32>
    %cst_71 = arith.constant 1.000000e+00 : f32
    %362 = vector.broadcast %cst_71 : f32 to vector<2x32xf32>
    %363 = arith.subf %362, %354 : vector<2x32xf32>
    %364 = arith.mulf %363, %361 : vector<2x32xf32>
    %365 = arith.mulf %354, %303 : vector<2x32xf32>
    %366 = arith.addf %364, %365 : vector<2x32xf32>
    %cst_72 = arith.constant dense<0.000000e+00> : vector<2x96xf32>
    %367 = tpu.matmul %366, %11, %cst_72 {dimension_numbers = #tpu.dot_dimension_numbers<[1], [0], [0], [1], [0, 0, 1, 1], [], []>} : vector<2x32xf32>, vector<32x96xf32>, vector<2x96xf32> -> vector<2x96xf32>
    %368 = vector.broadcast %14 : vector<1x96xf32> to vector<2x96xf32>
    %369 = arith.addf %367, %368 : vector<2x96xf32>
    %cst_73 = arith.constant dense<0.000000e+00> : vector<2x96xf32>
    %370 = tpu.matmul %335, %13, %cst_73 {dimension_numbers = #tpu.dot_dimension_numbers<[1], [0], [0], [1], [0, 0, 1, 1], [], []>} : vector<2x32xf32>, vector<32x96xf32>, vector<2x96xf32> -> vector<2x96xf32>
    %371 = vector.extract_strided_slice %369 {offsets = [0, 0], sizes = [2, 32], strides = [1, 1]} : vector<2x96xf32> to vector<2x32xf32>
    %372 = vector.extract_strided_slice %370 {offsets = [0, 0], sizes = [2, 32], strides = [1, 1]} : vector<2x96xf32> to vector<2x32xf32>
    %373 = arith.addf %371, %372 : vector<2x32xf32>
    %374 = arith.negf %373 : vector<2x32xf32>
    %375 = math.exp %374 : vector<2x32xf32>
    %cst_74 = arith.constant 1.000000e+00 : f32
    %376 = vector.broadcast %cst_74 : f32 to vector<2x32xf32>
    %377 = arith.addf %376, %375 : vector<2x32xf32>
    %378 = arith.divf %376, %377 : vector<2x32xf32>
    %379 = vector.extract_strided_slice %369 {offsets = [0, 32], sizes = [2, 32], strides = [1, 1]} : vector<2x96xf32> to vector<2x32xf32>
    %380 = vector.extract_strided_slice %370 {offsets = [0, 32], sizes = [2, 32], strides = [1, 1]} : vector<2x96xf32> to vector<2x32xf32>
    %381 = arith.addf %379, %380 : vector<2x32xf32>
    %382 = arith.negf %381 : vector<2x32xf32>
    %383 = math.exp %382 : vector<2x32xf32>
    %cst_75 = arith.constant 1.000000e+00 : f32
    %384 = vector.broadcast %cst_75 : f32 to vector<2x32xf32>
    %385 = arith.addf %384, %383 : vector<2x32xf32>
    %386 = arith.divf %384, %385 : vector<2x32xf32>
    %387 = vector.extract_strided_slice %369 {offsets = [0, 64], sizes = [2, 32], strides = [1, 1]} : vector<2x96xf32> to vector<2x32xf32>
    %388 = vector.extract_strided_slice %370 {offsets = [0, 64], sizes = [2, 32], strides = [1, 1]} : vector<2x96xf32> to vector<2x32xf32>
    %389 = vector.broadcast %16 : vector<1x32xf32> to vector<2x32xf32>
    %390 = arith.addf %388, %389 : vector<2x32xf32>
    %391 = arith.mulf %378, %390 : vector<2x32xf32>
    %392 = arith.addf %387, %391 : vector<2x32xf32>
    %393 = math.tanh %392 : vector<2x32xf32>
    %cst_76 = arith.constant 1.000000e+00 : f32
    %394 = vector.broadcast %cst_76 : f32 to vector<2x32xf32>
    %395 = arith.subf %394, %386 : vector<2x32xf32>
    %396 = arith.mulf %395, %393 : vector<2x32xf32>
    %397 = arith.mulf %386, %335 : vector<2x32xf32>
    %398 = arith.addf %396, %397 : vector<2x32xf32>
    %399 = vector.extract_strided_slice %7 {offsets = [0, 6, 0], sizes = [2, 1, 96], strides = [1, 1, 1]} : vector<2x8x96xf32> to vector<2x1x96xf32>
    %400 = vector.shape_cast %399 : vector<2x1x96xf32> to vector<2x96xf32>
    %cst_77 = arith.constant dense<0.000000e+00> : vector<2x96xf32>
    %401 = tpu.matmul %366, %9, %cst_77 {dimension_numbers = #tpu.dot_dimension_numbers<[1], [0], [0], [1], [0, 0, 1, 1], [], []>} : vector<2x32xf32>, vector<32x96xf32>, vector<2x96xf32> -> vector<2x96xf32>
    %402 = vector.extract_strided_slice %400 {offsets = [0, 0], sizes = [2, 32], strides = [1, 1]} : vector<2x96xf32> to vector<2x32xf32>
    %403 = vector.extract_strided_slice %401 {offsets = [0, 0], sizes = [2, 32], strides = [1, 1]} : vector<2x96xf32> to vector<2x32xf32>
    %404 = arith.addf %402, %403 : vector<2x32xf32>
    %405 = arith.negf %404 : vector<2x32xf32>
    %406 = math.exp %405 : vector<2x32xf32>
    %cst_78 = arith.constant 1.000000e+00 : f32
    %407 = vector.broadcast %cst_78 : f32 to vector<2x32xf32>
    %408 = arith.addf %407, %406 : vector<2x32xf32>
    %409 = arith.divf %407, %408 : vector<2x32xf32>
    %410 = vector.extract_strided_slice %400 {offsets = [0, 32], sizes = [2, 32], strides = [1, 1]} : vector<2x96xf32> to vector<2x32xf32>
    %411 = vector.extract_strided_slice %401 {offsets = [0, 32], sizes = [2, 32], strides = [1, 1]} : vector<2x96xf32> to vector<2x32xf32>
    %412 = arith.addf %410, %411 : vector<2x32xf32>
    %413 = arith.negf %412 : vector<2x32xf32>
    %414 = math.exp %413 : vector<2x32xf32>
    %cst_79 = arith.constant 1.000000e+00 : f32
    %415 = vector.broadcast %cst_79 : f32 to vector<2x32xf32>
    %416 = arith.addf %415, %414 : vector<2x32xf32>
    %417 = arith.divf %415, %416 : vector<2x32xf32>
    %418 = vector.extract_strided_slice %400 {offsets = [0, 64], sizes = [2, 32], strides = [1, 1]} : vector<2x96xf32> to vector<2x32xf32>
    %419 = vector.extract_strided_slice %401 {offsets = [0, 64], sizes = [2, 32], strides = [1, 1]} : vector<2x96xf32> to vector<2x32xf32>
    %420 = vector.broadcast %15 : vector<1x32xf32> to vector<2x32xf32>
    %421 = arith.addf %419, %420 : vector<2x32xf32>
    %422 = arith.mulf %409, %421 : vector<2x32xf32>
    %423 = arith.addf %418, %422 : vector<2x32xf32>
    %424 = math.tanh %423 : vector<2x32xf32>
    %cst_80 = arith.constant 1.000000e+00 : f32
    %425 = vector.broadcast %cst_80 : f32 to vector<2x32xf32>
    %426 = arith.subf %425, %417 : vector<2x32xf32>
    %427 = arith.mulf %426, %424 : vector<2x32xf32>
    %428 = arith.mulf %417, %366 : vector<2x32xf32>
    %429 = arith.addf %427, %428 : vector<2x32xf32>
    %cst_81 = arith.constant dense<0.000000e+00> : vector<2x96xf32>
    %430 = tpu.matmul %429, %11, %cst_81 {dimension_numbers = #tpu.dot_dimension_numbers<[1], [0], [0], [1], [0, 0, 1, 1], [], []>} : vector<2x32xf32>, vector<32x96xf32>, vector<2x96xf32> -> vector<2x96xf32>
    %431 = vector.broadcast %14 : vector<1x96xf32> to vector<2x96xf32>
    %432 = arith.addf %430, %431 : vector<2x96xf32>
    %cst_82 = arith.constant dense<0.000000e+00> : vector<2x96xf32>
    %433 = tpu.matmul %398, %13, %cst_82 {dimension_numbers = #tpu.dot_dimension_numbers<[1], [0], [0], [1], [0, 0, 1, 1], [], []>} : vector<2x32xf32>, vector<32x96xf32>, vector<2x96xf32> -> vector<2x96xf32>
    %434 = vector.extract_strided_slice %432 {offsets = [0, 0], sizes = [2, 32], strides = [1, 1]} : vector<2x96xf32> to vector<2x32xf32>
    %435 = vector.extract_strided_slice %433 {offsets = [0, 0], sizes = [2, 32], strides = [1, 1]} : vector<2x96xf32> to vector<2x32xf32>
    %436 = arith.addf %434, %435 : vector<2x32xf32>
    %437 = arith.negf %436 : vector<2x32xf32>
    %438 = math.exp %437 : vector<2x32xf32>
    %cst_83 = arith.constant 1.000000e+00 : f32
    %439 = vector.broadcast %cst_83 : f32 to vector<2x32xf32>
    %440 = arith.addf %439, %438 : vector<2x32xf32>
    %441 = arith.divf %439, %440 : vector<2x32xf32>
    %442 = vector.extract_strided_slice %432 {offsets = [0, 32], sizes = [2, 32], strides = [1, 1]} : vector<2x96xf32> to vector<2x32xf32>
    %443 = vector.extract_strided_slice %433 {offsets = [0, 32], sizes = [2, 32], strides = [1, 1]} : vector<2x96xf32> to vector<2x32xf32>
    %444 = arith.addf %442, %443 : vector<2x32xf32>
    %445 = arith.negf %444 : vector<2x32xf32>
    %446 = math.exp %445 : vector<2x32xf32>
    %cst_84 = arith.constant 1.000000e+00 : f32
    %447 = vector.broadcast %cst_84 : f32 to vector<2x32xf32>
    %448 = arith.addf %447, %446 : vector<2x32xf32>
    %449 = arith.divf %447, %448 : vector<2x32xf32>
    %450 = vector.extract_strided_slice %432 {offsets = [0, 64], sizes = [2, 32], strides = [1, 1]} : vector<2x96xf32> to vector<2x32xf32>
    %451 = vector.extract_strided_slice %433 {offsets = [0, 64], sizes = [2, 32], strides = [1, 1]} : vector<2x96xf32> to vector<2x32xf32>
    %452 = vector.broadcast %16 : vector<1x32xf32> to vector<2x32xf32>
    %453 = arith.addf %451, %452 : vector<2x32xf32>
    %454 = arith.mulf %441, %453 : vector<2x32xf32>
    %455 = arith.addf %450, %454 : vector<2x32xf32>
    %456 = math.tanh %455 : vector<2x32xf32>
    %cst_85 = arith.constant 1.000000e+00 : f32
    %457 = vector.broadcast %cst_85 : f32 to vector<2x32xf32>
    %458 = arith.subf %457, %449 : vector<2x32xf32>
    %459 = arith.mulf %458, %456 : vector<2x32xf32>
    %460 = arith.mulf %449, %398 : vector<2x32xf32>
    %461 = arith.addf %459, %460 : vector<2x32xf32>
    %462 = vector.extract_strided_slice %7 {offsets = [0, 7, 0], sizes = [2, 1, 96], strides = [1, 1, 1]} : vector<2x8x96xf32> to vector<2x1x96xf32>
    %463 = vector.shape_cast %462 : vector<2x1x96xf32> to vector<2x96xf32>
    %cst_86 = arith.constant dense<0.000000e+00> : vector<2x96xf32>
    %464 = tpu.matmul %429, %9, %cst_86 {dimension_numbers = #tpu.dot_dimension_numbers<[1], [0], [0], [1], [0, 0, 1, 1], [], []>} : vector<2x32xf32>, vector<32x96xf32>, vector<2x96xf32> -> vector<2x96xf32>
    %465 = vector.extract_strided_slice %463 {offsets = [0, 0], sizes = [2, 32], strides = [1, 1]} : vector<2x96xf32> to vector<2x32xf32>
    %466 = vector.extract_strided_slice %464 {offsets = [0, 0], sizes = [2, 32], strides = [1, 1]} : vector<2x96xf32> to vector<2x32xf32>
    %467 = arith.addf %465, %466 : vector<2x32xf32>
    %468 = arith.negf %467 : vector<2x32xf32>
    %469 = math.exp %468 : vector<2x32xf32>
    %cst_87 = arith.constant 1.000000e+00 : f32
    %470 = vector.broadcast %cst_87 : f32 to vector<2x32xf32>
    %471 = arith.addf %470, %469 : vector<2x32xf32>
    %472 = arith.divf %470, %471 : vector<2x32xf32>
    %473 = vector.extract_strided_slice %463 {offsets = [0, 32], sizes = [2, 32], strides = [1, 1]} : vector<2x96xf32> to vector<2x32xf32>
    %474 = vector.extract_strided_slice %464 {offsets = [0, 32], sizes = [2, 32], strides = [1, 1]} : vector<2x96xf32> to vector<2x32xf32>
    %475 = arith.addf %473, %474 : vector<2x32xf32>
    %476 = arith.negf %475 : vector<2x32xf32>
    %477 = math.exp %476 : vector<2x32xf32>
    %cst_88 = arith.constant 1.000000e+00 : f32
    %478 = vector.broadcast %cst_88 : f32 to vector<2x32xf32>
    %479 = arith.addf %478, %477 : vector<2x32xf32>
    %480 = arith.divf %478, %479 : vector<2x32xf32>
    %481 = vector.extract_strided_slice %463 {offsets = [0, 64], sizes = [2, 32], strides = [1, 1]} : vector<2x96xf32> to vector<2x32xf32>
    %482 = vector.extract_strided_slice %464 {offsets = [0, 64], sizes = [2, 32], strides = [1, 1]} : vector<2x96xf32> to vector<2x32xf32>
    %483 = vector.broadcast %15 : vector<1x32xf32> to vector<2x32xf32>
    %484 = arith.addf %482, %483 : vector<2x32xf32>
    %485 = arith.mulf %472, %484 : vector<2x32xf32>
    %486 = arith.addf %481, %485 : vector<2x32xf32>
    %487 = math.tanh %486 : vector<2x32xf32>
    %cst_89 = arith.constant 1.000000e+00 : f32
    %488 = vector.broadcast %cst_89 : f32 to vector<2x32xf32>
    %489 = arith.subf %488, %480 : vector<2x32xf32>
    %490 = arith.mulf %489, %487 : vector<2x32xf32>
    %491 = arith.mulf %480, %429 : vector<2x32xf32>
    %492 = arith.addf %490, %491 : vector<2x32xf32>
    %cst_90 = arith.constant dense<0.000000e+00> : vector<2x96xf32>
    %493 = tpu.matmul %492, %11, %cst_90 {dimension_numbers = #tpu.dot_dimension_numbers<[1], [0], [0], [1], [0, 0, 1, 1], [], []>} : vector<2x32xf32>, vector<32x96xf32>, vector<2x96xf32> -> vector<2x96xf32>
    %494 = vector.broadcast %14 : vector<1x96xf32> to vector<2x96xf32>
    %495 = arith.addf %493, %494 : vector<2x96xf32>
    %cst_91 = arith.constant dense<0.000000e+00> : vector<2x96xf32>
    %496 = tpu.matmul %461, %13, %cst_91 {dimension_numbers = #tpu.dot_dimension_numbers<[1], [0], [0], [1], [0, 0, 1, 1], [], []>} : vector<2x32xf32>, vector<32x96xf32>, vector<2x96xf32> -> vector<2x96xf32>
    %497 = vector.extract_strided_slice %495 {offsets = [0, 0], sizes = [2, 32], strides = [1, 1]} : vector<2x96xf32> to vector<2x32xf32>
    %498 = vector.extract_strided_slice %496 {offsets = [0, 0], sizes = [2, 32], strides = [1, 1]} : vector<2x96xf32> to vector<2x32xf32>
    %499 = arith.addf %497, %498 : vector<2x32xf32>
    %500 = arith.negf %499 : vector<2x32xf32>
    %501 = math.exp %500 : vector<2x32xf32>
    %cst_92 = arith.constant 1.000000e+00 : f32
    %502 = vector.broadcast %cst_92 : f32 to vector<2x32xf32>
    %503 = arith.addf %502, %501 : vector<2x32xf32>
    %504 = arith.divf %502, %503 : vector<2x32xf32>
    %505 = vector.extract_strided_slice %495 {offsets = [0, 32], sizes = [2, 32], strides = [1, 1]} : vector<2x96xf32> to vector<2x32xf32>
    %506 = vector.extract_strided_slice %496 {offsets = [0, 32], sizes = [2, 32], strides = [1, 1]} : vector<2x96xf32> to vector<2x32xf32>
    %507 = arith.addf %505, %506 : vector<2x32xf32>
    %508 = arith.negf %507 : vector<2x32xf32>
    %509 = math.exp %508 : vector<2x32xf32>
    %cst_93 = arith.constant 1.000000e+00 : f32
    %510 = vector.broadcast %cst_93 : f32 to vector<2x32xf32>
    %511 = arith.addf %510, %509 : vector<2x32xf32>
    %512 = arith.divf %510, %511 : vector<2x32xf32>
    %513 = vector.extract_strided_slice %495 {offsets = [0, 64], sizes = [2, 32], strides = [1, 1]} : vector<2x96xf32> to vector<2x32xf32>
    %514 = vector.extract_strided_slice %496 {offsets = [0, 64], sizes = [2, 32], strides = [1, 1]} : vector<2x96xf32> to vector<2x32xf32>
    %515 = vector.broadcast %16 : vector<1x32xf32> to vector<2x32xf32>
    %516 = arith.addf %514, %515 : vector<2x32xf32>
    %517 = arith.mulf %504, %516 : vector<2x32xf32>
    %518 = arith.addf %513, %517 : vector<2x32xf32>
    %519 = math.tanh %518 : vector<2x32xf32>
    %cst_94 = arith.constant 1.000000e+00 : f32
    %520 = vector.broadcast %cst_94 : f32 to vector<2x32xf32>
    %521 = arith.subf %520, %512 : vector<2x32xf32>
    %522 = arith.mulf %521, %519 : vector<2x32xf32>
    %523 = arith.mulf %512, %461 : vector<2x32xf32>
    %524 = arith.addf %522, %523 : vector<2x32xf32>
    %cst_95 = arith.constant dense<0.000000e+00> : vector<2xf32>
    %525 = vector.multi_reduction <add>, %524, %cst_95 [1] : vector<2x32xf32> to vector<2xf32>
    %526 = vector.shape_cast %525 : vector<2xf32> to vector<2x1xf32>
    %cst_96 = arith.constant 3.200000e+01 : f32
    %527 = vector.broadcast %cst_96 : f32 to vector<2x1xf32>
    %528 = arith.divf %526, %527 : vector<2x1xf32>
    %529 = vector.broadcast %528 : vector<2x1xf32> to vector<2x32xf32>
    %530 = arith.subf %524, %529 : vector<2x32xf32>
    %531 = arith.mulf %530, %530 : vector<2x32xf32>
    %cst_97 = arith.constant dense<0.000000e+00> : vector<2xf32>
    %532 = vector.multi_reduction <add>, %531, %cst_97 [1] : vector<2x32xf32> to vector<2xf32>
    %533 = vector.shape_cast %532 : vector<2xf32> to vector<2x1xf32>
    %cst_98 = arith.constant 3.200000e+01 : f32
    %534 = vector.broadcast %cst_98 : f32 to vector<2x1xf32>
    %535 = arith.divf %533, %534 : vector<2x1xf32>
    %536 = vector.broadcast %528 : vector<2x1xf32> to vector<2x32xf32>
    %537 = arith.subf %524, %536 : vector<2x32xf32>
    %cst_99 = arith.constant 9.99999997E-7 : f32
    %538 = vector.broadcast %cst_99 : f32 to vector<2x1xf32>
    %539 = arith.addf %535, %538 : vector<2x1xf32>
    %540 = math.rsqrt %539 : vector<2x1xf32>
    %541 = vector.broadcast %540 : vector<2x1xf32> to vector<2x32xf32>
    %542 = arith.mulf %537, %541 : vector<2x32xf32>
    %543 = vector.broadcast %17 : vector<1x32xf32> to vector<2x32xf32>
    %544 = arith.mulf %542, %543 : vector<2x32xf32>
    %545 = vector.broadcast %18 : vector<1x32xf32> to vector<2x32xf32>
    %546 = arith.addf %544, %545 : vector<2x32xf32>
    %c0_100 = arith.constant 0 : index
    %c0_101 = arith.constant 0 : index
    %547 = vector.load %arg4[%c0_100, %c0_101] : memref<2x32xf32, #tpu.memory_space<vmem>>, vector<2x32xf32>
    tpu.vector_store %arg4[%c0_100, %c0_101], %546 {strides = array<i32>} : memref<2x32xf32, #tpu.memory_space<vmem>>, vector<2x32xf32>,
    return
  }
}

</mosaic_0001>

<llo_original>
// kernel: enc_lstm_forward.1
$region0: #{enc_lstm_forward.1}
  #allocation0 [shape = 'u32[]', space=smem, size = 0x4, offset = 0x4, fixed_abs, tag = 'smem constant byte address 0x4 - core index']
  #allocation1 [shape = 'u32[72,128]{1,0:T(1,128)}', space=vmem, size = 0x9000, scoped, tag = 'internal scratch']
  %s0 = inlined_call_operand.hbm [shape: f32[2,8,32], index: 0, kind: input, shape index: {}]
  %s1 = inlined_call_operand.hbm [shape: f32[32,96], index: 1, kind: input, shape index: {}]
  %s2 = inlined_call_operand.hbm [shape: f32[3,32,96], index: 2, kind: input, shape index: {}]
  %s3 = inlined_call_operand.hbm [shape: f32[4,96], index: 3, kind: input, shape index: {}]
  %s4 = inlined_call_operand.hbm [shape: f32[2,32], index: 4, kind: output, shape index: {}]
  %s5 = sld [smem:[#allocation0]]
  $region42: #{enc_lstm_forward.1} parent=0
    _
  %s7 = ssub.s32 1, %s5
  %s8 = scalar_select 0, %s7, %s5
  $region1: #{enc_lstm_forward.1} parent=0
    #allocation2 [shape = 'u8[8192]{0}', space=vmem, size = 0x2000, scoped, tag = 'input window, operand 0, single buffered']
    #allocation3 [shape = 's32[1]{0}', space=sflag, size = 0x4, scoped, tag = 'scoped memory for enc_lstm_forward.1']
    #allocation4 [shape = 's32[1]{0}', space=sflag, size = 0x4, scoped, tag = 'scoped memory for enc_lstm_forward.1']
    #allocation5 [shape = 'u8[16384]{0}', space=vmem, size = 0x4000, scoped, tag = 'input window, operand 1, single buffered']
    #allocation6 [shape = 's32[1]{0}', space=sflag, size = 0x4, scoped, tag = 'scoped memory for enc_lstm_forward.1']
    #allocation7 [shape = 'u8[49152]{0}', space=vmem, size = 0xc000, scoped, tag = 'input window, operand 2, single buffered']
    #allocation8 [shape = 'u8[2048]{0}', space=vmem, size = 0x800, scoped, tag = 'input window, operand 3, single buffered']
    #allocation9 [shape = 's32[1]{0}', space=sflag, size = 0x4, scoped, tag = 'scoped memory for enc_lstm_forward.1']
    #allocation10 [shape = 'u8[1024]{0}', space=vmem, size = 0x400, scoped, tag = 'output window, operand 0, single buffered']
    %9 = vsyncpa [#allocation3], 0
    %10 = vsyncpa [#allocation6], 0
    %11 = vsyncpa [#allocation9], 0
    %12 = vsyncpa [#allocation4], 0
    // Predicated region
    $region2: #{enc_lstm_forward.1} parent=1 // pred_check
      _
    $region3: #{enc_lstm_forward.1} parent=1 // pred_check_branch
      %14 = sbr.rel (0) target = $region5
    $region4: #{enc_lstm_forward.1} parent=1 // pred_region
      %16 = vsyncadd [#allocation3], 0
      %s17 = sshll.u32 %s0, 4
      %s18 = int_to_ptr.hbm [resolvable:$true] %s17
      %s19 = sshll.u32 [#allocation2], 4
      %s20 = int_to_ptr.vmem [resolvable:$true] %s19
      %25 = dma.hbm_to_vmem [thread:$0]  %s18, 256, %s20, [#allocation3], 128, 128, 8
    $region5: #{enc_lstm_forward.1} parent=1 // pred_fallthru
      _
    // Predicated region
    $region6: #{enc_lstm_forward.1} parent=1 // pred_check
      _
    $region7: #{enc_lstm_forward.1} parent=1 // pred_check_branch
      %27 = sbr.rel (0) target = $region9
    $region8: #{enc_lstm_forward.1} parent=1 // pred_region
      %29 = vsyncadd [#allocation6], 0
      %s30 = sshll.u32 %s1, 4
      %s31 = int_to_ptr.hbm [resolvable:$true] %s30
      %s32 = sshll.u32 [#allocation5], 4
      %s33 = int_to_ptr.vmem [resolvable:$true] %s32
      %38 = dma.hbm_to_vmem [thread:$0]  %s31, 512, %s33, [#allocation6], 128, 128, 8
    $region9: #{enc_lstm_forward.1} parent=1 // pred_fallthru
      _
    // Predicated region
    $region10: #{enc_lstm_forward.1} parent=1 // pred_check
      _
    $region11: #{enc_lstm_forward.1} parent=1 // pred_check_branch
      %40 = sbr.rel (0) target = $region13
    $region12: #{enc_lstm_forward.1} parent=1 // pred_region
      %42 = vsyncadd [#allocation6], 0
      %s43 = sshll.u32 %s2, 4
      %s44 = int_to_ptr.hbm [resolvable:$true] %s43
      %s45 = sshll.u32 [#allocation7], 4
      %s46 = int_to_ptr.vmem [resolvable:$true] %s45
      %51 = dma.hbm_to_vmem [thread:$0]  %s44, 1536, %s46, [#allocation6], 128, 128, 8
    $region13: #{enc_lstm_forward.1} parent=1 // pred_fallthru
      _
    // Predicated region
    $region14: #{enc_lstm_forward.1} parent=1 // pred_check
      _
    $region15: #{enc_lstm_forward.1} parent=1 // pred_check_branch
      %53 = sbr.rel (0) target = $region17
    $region16: #{enc_lstm_forward.1} parent=1 // pred_region
      %55 = vsyncadd [#allocation9], 0
      %s57 = sshll.u32 %s3, 4
      %s58 = int_to_ptr.hbm [resolvable:$true] %s57
      %s59 = sshll.u32 [#allocation8], 4
      %s60 = int_to_ptr.vmem [resolvable:$true] %s59
      %62 = dma.hbm_to_vmem [thread:$0]  %s58, 64, %s60, [#allocation9]
    $region17: #{enc_lstm_forward.1} parent=1 // pred_fallthru
      _
    // Predicated region
    $region18: #{enc_lstm_forward.1} parent=1 // pred_check
      _
    $region19: #{enc_lstm_forward.1} parent=1 // pred_check_branch
      %64 = sbr.rel (0) target = $region21
    $region20: #{enc_lstm_forward.1} parent=1 // pred_region
      %66 = dma.done [#allocation3], 256
    $region21: #{enc_lstm_forward.1} parent=1 // pred_fallthru
      _
    // Predicated region
    $region22: #{enc_lstm_forward.1} parent=1 // pred_check
      _
    $region23: #{enc_lstm_forward.1} parent=1 // pred_check_branch
      %68 = sbr.rel (0) target = $region25
    $region24: #{enc_lstm_forward.1} parent=1 // pred_region
      %70 = dma.done [#allocation6], 512
    $region25: #{enc_lstm_forward.1} parent=1 // pred_fallthru
      _
    // Predicated region
    $region26: #{enc_lstm_forward.1} parent=1 // pred_check
      _
    $region27: #{enc_lstm_forward.1} parent=1 // pred_check_branch
      %72 = sbr.rel (0) target = $region29
    $region28: #{enc_lstm_forward.1} parent=1 // pred_region
      %74 = dma.done [#allocation6], 1536
    $region29: #{enc_lstm_forward.1} parent=1 // pred_fallthru
      _
    // Predicated region
    $region30: #{enc_lstm_forward.1} parent=1 // pred_check
      _
    $region31: #{enc_lstm_forward.1} parent=1 // pred_check_branch
      %76 = sbr.rel (0) target = $region33
    $region32: #{enc_lstm_forward.1} parent=1 // pred_region
      %78 = dma.done [#allocation9], 64
    $region33: #{enc_lstm_forward.1} parent=1 // pred_fallthru
      _
    %v79 = vld [vmem:[#allocation2] sm:$0xff]
    %v80 = vld [vmem:[#allocation2 + $0x8] sm:$0xff]
    %v81 = vld [vmem:[#allocation5] sm:$0xff]
    %v82 = vld [vmem:[#allocation5 + $0x8] sm:$0xff]
    %v83 = vld [vmem:[#allocation5 + $0x10] sm:$0xff]
    %v84 = vld [vmem:[#allocation5 + $0x18] sm:$0xff]
    %v85 = vld [vmem:[#allocation8] sm:$0x1]
    %v86 = vperm.slane %v85, 0
    %vm87 = vcmask 261120
    %v89 = vsel %vm87, %v79, 0
    %v92 = vsel %vm87, %v80, 0
    %94 = vmatpush.msra.mxu0 0.0
    %95 = vmatpush.msra.mxu0 0.0
    %96 = vmatpush.msra.mxu0 0.0
    %97 = vmatpush.msra.mxu0 0.0
    %98 = vmatpush.msra.mxu0 0.0
    %99 = vmatpush.msra.mxu0 0.0
    %100 = vmatpush.msra.mxu0 0.0
    %101 = vmatpush.msra.mxu0 0.0
    %102 = vmatpush.msra.mxu0 0.0
    %103 = vmatpush.msra.mxu0 0.0
    %104 = vmatpush.msra.mxu0 0.0
    %105 = vmatpush.msra.mxu0 0.0
    %106 = vmatpush.msra.mxu0 %v84
    %107 = vmatpush.msra.mxu0 %v83
    %108 = vmatpush.msra.mxu0 %v82
    %109 = vmatpush.msra.mxu0 %v81
    %110 = vmatmul.f32.gmra.mxu0 %v89
    %v111 = vpop.f32.mrf.mxu0
    %v112 = vadd.f32 %v86, %v111
    %113 = vmatmul.f32.gmra.mxu0 %v92
    %v114 = vpop.f32.mrf.mxu0
    %v115 = vadd.f32 %v86, %v114
    %116 = vdwg.mxu0
    %v117 = vld [vmem:[#allocation7] sm:$0xff]
    %v118 = vld [vmem:[#allocation7 + $0x8] sm:$0xff]
    %v119 = vld [vmem:[#allocation7 + $0x10] sm:$0xff]
    %v120 = vld [vmem:[#allocation7 + $0x18] sm:$0xff]
    %s121 = scalar_lea.vmem [#allocation7], 32
    %v122 = vld [vmem:[%s121] sm:$0xff]
    %v123 = vld [vmem:[%s121 + $0x8] sm:$0xff]
    %v124 = vld [vmem:[%s121 + $0x10] sm:$0xff]
    %v125 = vld [vmem:[%s121 + $0x18] sm:$0xff]
    %s126 = scalar_lea.vmem [#allocation7], 64
    %v127 = vld [vmem:[%s126] sm:$0xff]
    %v128 = vld [vmem:[%s126 + $0x8] sm:$0xff]
    %v129 = vld [vmem:[%s126 + $0x10] sm:$0xff]
    %v130 = vld [vmem:[%s126 + $0x18] sm:$0xff]
    %v131 = vld [vmem:[#allocation8 + $0x1] sm:$0x1]
    %v132 = vld [vmem:[#allocation8 + $0x2] sm:$0x1]
    %v133 = vld [vmem:[#allocation8 + $0x3] sm:$0x1]
    %v135 = vsel %vm87, 0.0, 0
    %137 = vmatpush.msra.mxu0 0.0
    %138 = vmatpush.msra.mxu0 0.0
    %139 = vmatpush.msra.mxu0 0.0
    %140 = vmatpush.msra.mxu0 0.0
    %141 = vmatpush.msra.mxu0 0.0
    %142 = vmatpush.msra.mxu0 0.0
    %143 = vmatpush.msra.mxu0 0.0
    %144 = vmatpush.msra.mxu0 0.0
    %145 = vmatpush.msra.mxu0 0.0
    %146 = vmatpush.msra.mxu0 0.0
    %147 = vmatpush.msra.mxu0 0.0
    %148 = vmatpush.msra.mxu0 0.0
    %149 = vmatpush.msra.mxu0 %v120
    %150 = vmatpush.msra.mxu0 %v119
    %151 = vmatpush.msra.mxu0 %v118
    %152 = vmatpush.msra.mxu0 %v117
    %153 = vmatmul.f32.gmra.mxu0 %v135
    %v154 = vpop.f32.mrf.mxu0
    %v155 = vadd.f32 0.0, %v154
    %156 = vdwg.mxu0
    %v158 = vrot.slane %v155, 1
    %v161 = vadd.f32 %v112, %v155
    %v162 = vadd.f32 %v115, %v158
    %v163 = vxor.u32 %v161, 2147483648
    %v164 = vxor.u32 %v162, 2147483648
    %v165 = vmul.f32 %v163, 1.442695
    %v166 = vpow.pop %v165
    %v167 = vmul.f32 %v164, 1.442695
    %v168 = vpow.pop %v167
    %v169 = vadd.f32 %v166, 1.0
    %v170 = vadd.f32 %v168, 1.0
    %v171 = vrcp.pop %v169
    %v172 = vmul.f32 %v169, %v171
    %v173 = vsub.f32 1.0, %v172
    %v174 = vmul.f32 %v171, %v173
    %v175 = vadd.f32 %v171, %v174
    %vm176 = vweird.f32 %v169
    %vm177 = vweird.f32 %v171
    %vm178 = vmor %vm176, %vm177
    %v179 = vsel %vm178, %v171, %v175
    %v180 = vand.u32 2147483647, %v169
    %vm181 = vcmp.eq.f32.partialorder %v180, 8.507059e+37
    %v182 = vand.u32 %v169, 2147483648
    %v183 = vor.u32 1.1754944e-38, %v182
    %v184 = vsel %vm181, %v183, %v179
    %v185 = vmul.f32 1.0, %v184
    %v186 = vrcp.pop %v170
    %v187 = vmul.f32 %v170, %v186
    %v188 = vsub.f32 1.0, %v187
    %v189 = vmul.f32 %v186, %v188
    %v190 = vadd.f32 %v186, %v189
    %vm191 = vweird.f32 %v170
    %vm192 = vweird.f32 %v186
    %vm193 = vmor %vm191, %vm192
    %v194 = vsel %vm193, %v186, %v190
    %v195 = vand.u32 2147483647, %v170
    %vm196 = vcmp.eq.f32.partialorder %v195, 8.507059e+37
    %v197 = vand.u32 %v170, 2147483648
    %v198 = vor.u32 1.1754944e-38, %v197
    %v199 = vsel %vm196, %v198, %v194
    %v200 = vmul.f32 1.0, %v199
    %v201 = vperm.slane %v132, 0
    %203 = vrot.lane.b32.xlu0 %v201, 64
    %v204 = vpop.permute.xlu0 %203
    %v206 = vadd.f32 %v155, %v204
    %v208 = vrot.slane %v206, 1
    %209 = vrot.lane.b32.xlu0 %v206, 64
    %v210 = vpop.permute.xlu0 %209
    %211 = vrot.lane.b32.xlu0 %v208, 64
    %v212 = vpop.permute.xlu0 %211
    %v215 = vmul.f32 %v185, %v210
    %v216 = vmul.f32 %v200, %v212
    %219 = vrot.lane.b32.xlu0 %v215, 64
    %v220 = vpop.permute.xlu0 %219
    %221 = vrot.lane.b32.xlu0 %v216, 64
    %v222 = vpop.permute.xlu0 %221
    %v225 = vadd.f32 %v112, %v220
    %v226 = vadd.f32 %v115, %v222
    %v227 = vtanh.pop %v225
    %v228 = vtanh.pop %v226
    %v229 = vsub.f32 1.0, %v185
    %v230 = vsub.f32 1.0, %v200
    %233 = vrot.lane.b32.xlu0 %v227, 96
    %v234 = vpop.permute.xlu0 %233
    %235 = vrot.lane.b32.xlu0 %v228, 96
    %v236 = vpop.permute.xlu0 %235
    %v239 = vmul.f32 %v229, %v234
    %v240 = vmul.f32 %v230, %v236
    %v241 = vmul.f32 %v185, 0.0
    %v242 = vmul.f32 %v200, 0.0
    %v243 = vadd.f32 %v239, %v241
    %v244 = vadd.f32 %v240, %v242
    %v245 = vperm.slane %v131, 0
    %v248 = vrot.slane %v244, 7
    %vm249 = vcmask 1041409
    %v250 = vsel %vm249, %v248, %v243
    %251 = vrot.lane.b32.xlu0 %v250, 96
    %v252 = vpop.permute.xlu0 %251
    %v253 = vsel %vm87, %v252, 0
    %255 = vmatpush.msra.mxu0 0.0
    %256 = vmatpush.msra.mxu0 0.0
    %257 = vmatpush.msra.mxu0 0.0
    %258 = vmatpush.msra.mxu0 0.0
    %259 = vmatpush.msra.mxu0 0.0
    %260 = vmatpush.msra.mxu0 0.0
    %261 = vmatpush.msra.mxu0 0.0
    %262 = vmatpush.msra.mxu0 0.0
    %263 = vmatpush.msra.mxu0 0.0
    %264 = vmatpush.msra.mxu0 0.0
    %265 = vmatpush.msra.mxu0 0.0
    %266 = vmatpush.msra.mxu0 0.0
    %267 = vmatpush.msra.mxu0 %v125
    %268 = vmatpush.msra.mxu0 %v124
    %269 = vmatpush.msra.mxu0 %v123
    %270 = vmatpush.msra.mxu0 %v122
    %271 = vmatmul.f32.gmra.mxu0 %v253
    %v272 = vpop.f32.mrf.mxu0
    %v273 = vadd.f32 %v245, %v272
    %274 = vdwg.mxu0
    %275 = vmatpush.msra.mxu0 0.0
    %276 = vmatpush.msra.mxu0 0.0
    %277 = vmatpush.msra.mxu0 0.0
    %278 = vmatpush.msra.mxu0 0.0
    %279 = vmatpush.msra.mxu0 0.0
    %280 = vmatpush.msra.mxu0 0.0
    %281 = vmatpush.msra.mxu0 0.0
    %282 = vmatpush.msra.mxu0 0.0
    %283 = vmatpush.msra.mxu0 0.0
    %284 = vmatpush.msra.mxu0 0.0
    %285 = vmatpush.msra.mxu0 0.0
    %286 = vmatpush.msra.mxu0 0.0
    %287 = vmatpush.msra.mxu0 %v130
    %288 = vmatpush.msra.mxu0 %v129
    %289 = vmatpush.msra.mxu0 %v128
    %290 = vmatpush.msra.mxu0 %v127
    %291 = vmatmul.f32.gmra.mxu0 %v135
    %v292 = vpop.f32.mrf.mxu0
    %v293 = vadd.f32 0.0, %v292
    %294 = vdwg.mxu0
    %v295 = vadd.f32 %v273, %v293
    %v296 = vxor.u32 %v295, 2147483648
    %v297 = vmul.f32 %v296, 1.442695
    %v298 = vpow.pop %v297
    %v299 = vadd.f32 %v298, 1.0
    %v300 = vrcp.pop %v299
    %v301 = vmul.f32 %v299, %v300
    %v302 = vsub.f32 1.0, %v301
    %v303 = vmul.f32 %v300, %v302
    %v304 = vadd.f32 %v300, %v303
    %vm305 = vweird.f32 %v299
    %vm306 = vweird.f32 %v300
    %vm307 = vmor %vm305, %vm306
    %v308 = vsel %vm307, %v300, %v304
    %v309 = vand.u32 2147483647, %v299
    %vm310 = vcmp.eq.f32.partialorder %v309, 8.507059e+37
    %v311 = vand.u32 %v299, 2147483648
    %v312 = vor.u32 1.1754944e-38, %v311
    %v313 = vsel %vm310, %v312, %v308
    %v314 = vmul.f32 1.0, %v313
    %315 = vrot.lane.b32.xlu0 %v201, 32
    %v316 = vpop.permute.xlu0 %315
    %v318 = vadd.f32 %v293, %v316
    %320 = vrot.lane.b32.xlu0 %v318, 64
    %v321 = vpop.permute.xlu0 %320
    %v323 = vmul.f32 %v314, %v321
    %325 = vrot.lane.b32.xlu0 %v323, 64
    %v326 = vpop.permute.xlu0 %325
    %v328 = vadd.f32 %v273, %v326
    %v329 = vtanh.pop %v328
    %v330 = vsub.f32 1.0, %v314
    %332 = vrot.lane.b32.xlu0 %v329, 96
    %v333 = vpop.permute.xlu0 %332
    %v335 = vmul.f32 %v330, %v333
    %v336 = vmul.f32 %v314, 0.0
    %v337 = vadd.f32 %v335, %v336
    %338 = vmatpush.msra.mxu0 0.0
    %339 = vmatpush.msra.mxu0 0.0
    %340 = vmatpush.msra.mxu0 0.0
    %341 = vmatpush.msra.mxu0 0.0
    %342 = vmatpush.msra.mxu0 0.0
    %343 = vmatpush.msra.mxu0 0.0
    %344 = vmatpush.msra.mxu0 0.0
    %345 = vmatpush.msra.mxu0 0.0
    %346 = vmatpush.msra.mxu0 0.0
    %347 = vmatpush.msra.mxu0 0.0
    %348 = vmatpush.msra.mxu0 0.0
    %349 = vmatpush.msra.mxu0 0.0
    %350 = vmatpush.msra.mxu0 %v120
    %351 = vmatpush.msra.mxu0 %v119
    %352 = vmatpush.msra.mxu0 %v118
    %353 = vmatpush.msra.mxu0 %v117
    %354 = vmatmul.f32.gmra.mxu0 %v253
    %v355 = vpop.f32.mrf.mxu0
    %v356 = vadd.f32 0.0, %v355
    %357 = vdwg.mxu0
    %v359 = vrot.slane %v356, 7
    %v362 = vadd.f32 %v112, %v359
    %v363 = vadd.f32 %v115, %v356
    %v364 = vxor.u32 %v362, 2147483648
    %v365 = vxor.u32 %v363, 2147483648
    %v366 = vmul.f32 %v364, 1.442695
    %v367 = vpow.pop %v366
    %v368 = vmul.f32 %v365, 1.442695
    %v369 = vpow.pop %v368
    %v370 = vadd.f32 %v367, 1.0
    %v371 = vadd.f32 %v369, 1.0
    %v372 = vrcp.pop %v370
    %v373 = vmul.f32 %v370, %v372
    %v374 = vsub.f32 1.0, %v373
    %v375 = vmul.f32 %v372, %v374
    %v376 = vadd.f32 %v372, %v375
    %vm377 = vweird.f32 %v370
    %vm378 = vweird.f32 %v372
    %vm379 = vmor %vm377, %vm378
    %v380 = vsel %vm379, %v372, %v376
    %v381 = vand.u32 2147483647, %v370
    %vm382 = vcmp.eq.f32.partialorder %v381, 8.507059e+37
    %v383 = vand.u32 %v370, 2147483648
    %v384 = vor.u32 1.1754944e-38, %v383
    %v385 = vsel %vm382, %v384, %v380
    %v386 = vmul.f32 1.0, %v385
    %v387 = vrcp.pop %v371
    %v388 = vmul.f32 %v371, %v387
    %v389 = vsub.f32 1.0, %v388
    %v390 = vmul.f32 %v387, %v389
    %v391 = vadd.f32 %v387, %v390
    %vm392 = vweird.f32 %v371
    %vm393 = vweird.f32 %v387
    %vm394 = vmor %vm392, %vm393
    %v395 = vsel %vm394, %v387, %v391
    %v396 = vand.u32 2147483647, %v371
    %vm397 = vcmp.eq.f32.partialorder %v396, 8.507059e+37
    %v398 = vand.u32 %v371, 2147483648
    %v399 = vor.u32 1.1754944e-38, %v398
    %v400 = vsel %vm397, %v399, %v395
    %v401 = vmul.f32 1.0, %v400
    %v402 = vadd.f32 %v356, %v204
    %v404 = vrot.slane %v402, 7
    %405 = vrot.lane.b32.xlu0 %v404, 64
    %v406 = vpop.permute.xlu0 %405
    %407 = vrot.lane.b32.xlu0 %v402, 64
    %v408 = vpop.permute.xlu0 %407
    %v411 = vmul.f32 %v386, %v406
    %v412 = vmul.f32 %v401, %v408
    %415 = vrot.lane.b32.xlu0 %v411, 64
    %v416 = vpop.permute.xlu0 %415
    %417 = vrot.lane.b32.xlu0 %v412, 64
    %v418 = vpop.permute.xlu0 %417
    %v421 = vadd.f32 %v112, %v416
    %v422 = vadd.f32 %v115, %v418
    %v423 = vtanh.pop %v421
    %v424 = vtanh.pop %v422
    %v425 = vsub.f32 1.0, %v386
    %v426 = vsub.f32 1.0, %v401
    %429 = vrot.lane.b32.xlu0 %v423, 96
    %v430 = vpop.permute.xlu0 %429
    %431 = vrot.lane.b32.xlu0 %v424, 96
    %v432 = vpop.permute.xlu0 %431
    %v435 = vmul.f32 %v425, %v430
    %v436 = vmul.f32 %v426, %v432
    %v437 = vrot.slane %v243, 7
    %v440 = vmul.f32 %v386, %v437
    %v441 = vmul.f32 %v401, %v248
    %v442 = vadd.f32 %v435, %v440
    %v443 = vadd.f32 %v436, %v441
    %v446 = vrot.slane %v442, 1
    %v447 = vsel %vm249, %v443, %v446
    %448 = vrot.lane.b32.xlu0 %v447, 96
    %v449 = vpop.permute.xlu0 %448
    %v450 = vsel %vm87, %v449, 0
    %452 = vmatpush.msra.mxu0 0.0
    %453 = vmatpush.msra.mxu0 0.0
    %454 = vmatpush.msra.mxu0 0.0
    %455 = vmatpush.msra.mxu0 0.0
    %456 = vmatpush.msra.mxu0 0.0
    %457 = vmatpush.msra.mxu0 0.0
    %458 = vmatpush.msra.mxu0 0.0
    %459 = vmatpush.msra.mxu0 0.0
    %460 = vmatpush.msra.mxu0 0.0
    %461 = vmatpush.msra.mxu0 0.0
    %462 = vmatpush.msra.mxu0 0.0
    %463 = vmatpush.msra.mxu0 0.0
    %464 = vmatpush.msra.mxu0 %v125
    %465 = vmatpush.msra.mxu0 %v124
    %466 = vmatpush.msra.mxu0 %v123
    %467 = vmatpush.msra.mxu0 %v122
    %468 = vmatmul.f32.gmra.mxu0 %v450
    %v469 = vpop.f32.mrf.mxu0
    %v470 = vadd.f32 %v245, %v469
    %471 = vdwg.mxu0
    %473 = vrot.lane.b32.xlu0 %v337, 96
    %v474 = vpop.permute.xlu0 %473
    %v475 = vsel %vm87, %v474, 0
    %477 = vmatpush.msra.mxu0 0.0
    %478 = vmatpush.msra.mxu0 0.0
    %479 = vmatpush.msra.mxu0 0.0
    %480 = vmatpush.msra.mxu0 0.0
    %481 = vmatpush.msra.mxu0 0.0
    %482 = vmatpush.msra.mxu0 0.0
    %483 = vmatpush.msra.mxu0 0.0
    %484 = vmatpush.msra.mxu0 0.0
    %485 = vmatpush.msra.mxu0 0.0
    %486 = vmatpush.msra.mxu0 0.0
    %487 = vmatpush.msra.mxu0 0.0
    %488 = vmatpush.msra.mxu0 0.0
    %489 = vmatpush.msra.mxu0 %v130
    %490 = vmatpush.msra.mxu0 %v129
    %491 = vmatpush.msra.mxu0 %v128
    %492 = vmatpush.msra.mxu0 %v127
    %493 = vmatmul.f32.gmra.mxu0 %v475
    %v494 = vpop.f32.mrf.mxu0
    %v495 = vadd.f32 0.0, %v494
    %496 = vdwg.mxu0
    %v497 = vadd.f32 %v470, %v495
    %v498 = vxor.u32 %v497, 2147483648
    %v499 = vmul.f32 %v498, 1.442695
    %v500 = vpow.pop %v499
    %v501 = vadd.f32 %v500, 1.0
    %v502 = vrcp.pop %v501
    %v503 = vmul.f32 %v501, %v502
    %v504 = vsub.f32 1.0, %v503
    %v505 = vmul.f32 %v502, %v504
    %v506 = vadd.f32 %v502, %v505
    %vm507 = vweird.f32 %v501
    %vm508 = vweird.f32 %v502
    %vm509 = vmor %vm507, %vm508
    %v510 = vsel %vm509, %v502, %v506
    %v511 = vand.u32 2147483647, %v501
    %vm512 = vcmp.eq.f32.partialorder %v511, 8.507059e+37
    %v513 = vand.u32 %v501, 2147483648
    %v514 = vor.u32 1.1754944e-38, %v513
    %v515 = vsel %vm512, %v514, %v510
    %v516 = vmul.f32 1.0, %v515
    %v517 = vadd.f32 %v495, %v316
    %519 = vrot.lane.b32.xlu0 %v517, 64
    %v520 = vpop.permute.xlu0 %519
    %v522 = vmul.f32 %v516, %v520
    %524 = vrot.lane.b32.xlu0 %v522, 64
    %v525 = vpop.permute.xlu0 %524
    %v527 = vadd.f32 %v470, %v525
    %v528 = vtanh.pop %v527
    %v529 = vsub.f32 1.0, %v516
    %531 = vrot.lane.b32.xlu0 %v528, 96
    %v532 = vpop.permute.xlu0 %531
    %v534 = vmul.f32 %v529, %v532
    %v535 = vmul.f32 %v516, %v337
    %v536 = vadd.f32 %v534, %v535
    %537 = vmatpush.msra.mxu0 0.0
    %538 = vmatpush.msra.mxu0 0.0
    %539 = vmatpush.msra.mxu0 0.0
    %540 = vmatpush.msra.mxu0 0.0
    %541 = vmatpush.msra.mxu0 0.0
    %542 = vmatpush.msra.mxu0 0.0
    %543 = vmatpush.msra.mxu0 0.0
    %544 = vmatpush.msra.mxu0 0.0
    %545 = vmatpush.msra.mxu0 0.0
    %546 = vmatpush.msra.mxu0 0.0
    %547 = vmatpush.msra.mxu0 0.0
    %548 = vmatpush.msra.mxu0 0.0
    %549 = vmatpush.msra.mxu0 %v120
    %550 = vmatpush.msra.mxu0 %v119
    %551 = vmatpush.msra.mxu0 %v118
    %552 = vmatpush.msra.mxu0 %v117
    %553 = vmatmul.f32.gmra.mxu0 %v450
    %v554 = vpop.f32.mrf.mxu0
    %v555 = vadd.f32 0.0, %v554
    %556 = vdwg.mxu0
    %v558 = vrot.slane %v555, 6
    %v559 = vrot.slane %v555, 7
    %v562 = vadd.f32 %v112, %v558
    %v563 = vadd.f32 %v115, %v559
    %v564 = vxor.u32 %v562, 2147483648
    %v565 = vxor.u32 %v563, 2147483648
    %v566 = vmul.f32 %v564, 1.442695
    %v567 = vpow.pop %v566
    %v568 = vmul.f32 %v565, 1.442695
    %v569 = vpow.pop %v568
    %v570 = vadd.f32 %v567, 1.0
    %v571 = vadd.f32 %v569, 1.0
    %v572 = vrcp.pop %v570
    %v573 = vmul.f32 %v570, %v572
    %v574 = vsub.f32 1.0, %v573
    %v575 = vmul.f32 %v572, %v574
    %v576 = vadd.f32 %v572, %v575
    %vm577 = vweird.f32 %v570
    %vm578 = vweird.f32 %v572
    %vm579 = vmor %vm577, %vm578
    %v580 = vsel %vm579, %v572, %v576
    %v581 = vand.u32 2147483647, %v570
    %vm582 = vcmp.eq.f32.partialorder %v581, 8.507059e+37
    %v583 = vand.u32 %v570, 2147483648
    %v584 = vor.u32 1.1754944e-38, %v583
    %v585 = vsel %vm582, %v584, %v580
    %v586 = vmul.f32 1.0, %v585
    %v587 = vrcp.pop %v571
    %v588 = vmul.f32 %v571, %v587
    %v589 = vsub.f32 1.0, %v588
    %v590 = vmul.f32 %v587, %v589
    %v591 = vadd.f32 %v587, %v590
    %vm592 = vweird.f32 %v571
    %vm593 = vweird.f32 %v587
    %vm594 = vmor %vm592, %vm593
    %v595 = vsel %vm594, %v587, %v591
    %v596 = vand.u32 2147483647, %v571
    %vm597 = vcmp.eq.f32.partialorder %v596, 8.507059e+37
    %v598 = vand.u32 %v571, 2147483648
    %v599 = vor.u32 1.1754944e-38, %v598
    %v600 = vsel %vm597, %v599, %v595
    %v601 = vmul.f32 1.0, %v600
    %v602 = vadd.f32 %v555, %v204
    %v604 = vrot.slane %v602, 6
    %v605 = vrot.slane %v602, 7
    %606 = vrot.lane.b32.xlu0 %v604, 64
    %v607 = vpop.permute.xlu0 %606
    %608 = vrot.lane.b32.xlu0 %v605, 64
    %v609 = vpop.permute.xlu0 %608
    %v612 = vmul.f32 %v586, %v607
    %v613 = vmul.f32 %v601, %v609
    %616 = vrot.lane.b32.xlu0 %v612, 64
    %v617 = vpop.permute.xlu0 %616
    %618 = vrot.lane.b32.xlu0 %v613, 64
    %v619 = vpop.permute.xlu0 %618
    %v622 = vadd.f32 %v112, %v617
    %v623 = vadd.f32 %v115, %v619
    %v624 = vtanh.pop %v622
    %v625 = vtanh.pop %v623
    %v626 = vsub.f32 1.0, %v586
    %v627 = vsub.f32 1.0, %v601
    %630 = vrot.lane.b32.xlu0 %v624, 96
    %v631 = vpop.permute.xlu0 %630
    %632 = vrot.lane.b32.xlu0 %v625, 96
    %v633 = vpop.permute.xlu0 %632
    %v636 = vmul.f32 %v626, %v631
    %v637 = vmul.f32 %v627, %v633
    %v638 = vrot.slane %v442, 7
    %v639 = vrot.slane %v443, 7
    %v642 = vmul.f32 %v586, %v638
    %v643 = vmul.f32 %v601, %v639
    %v644 = vadd.f32 %v636, %v642
    %v645 = vadd.f32 %v637, %v643
    %v648 = vrot.slane %v644, 2
    %v649 = vrot.slane %v645, 1
    %v650 = vsel %vm249, %v649, %v648
    %651 = vrot.lane.b32.xlu0 %v650, 96
    %v652 = vpop.permute.xlu0 %651
    %v653 = vsel %vm87, %v652, 0
    %655 = vmatpush.msra.mxu0 0.0
    %656 = vmatpush.msra.mxu0 0.0
    %657 = vmatpush.msra.mxu0 0.0
    %658 = vmatpush.msra.mxu0 0.0
    %659 = vmatpush.msra.mxu0 0.0
    %660 = vmatpush.msra.mxu0 0.0
    %661 = vmatpush.msra.mxu0 0.0
    %662 = vmatpush.msra.mxu0 0.0
    %663 = vmatpush.msra.mxu0 0.0
    %664 = vmatpush.msra.mxu0 0.0
    %665 = vmatpush.msra.mxu0 0.0
    %666 = vmatpush.msra.mxu0 0.0
    %667 = vmatpush.msra.mxu0 %v125
    %668 = vmatpush.msra.mxu0 %v124
    %669 = vmatpush.msra.mxu0 %v123
    %670 = vmatpush.msra.mxu0 %v122
    %671 = vmatmul.f32.gmra.mxu0 %v653
    %v672 = vpop.f32.mrf.mxu0
    %v673 = vadd.f32 %v245, %v672
    %674 = vdwg.mxu0
    %676 = vrot.lane.b32.xlu0 %v536, 96
    %v677 = vpop.permute.xlu0 %676
    %v678 = vsel %vm87, %v677, 0
    %680 = vmatpush.msra.mxu0 0.0
    %681 = vmatpush.msra.mxu0 0.0
    %682 = vmatpush.msra.mxu0 0.0
    %683 = vmatpush.msra.mxu0 0.0
    %684 = vmatpush.msra.mxu0 0.0
    %685 = vmatpush.msra.mxu0 0.0
    %686 = vmatpush.msra.mxu0 0.0
    %687 = vmatpush.msra.mxu0 0.0
    %688 = vmatpush.msra.mxu0 0.0
    %689 = vmatpush.msra.mxu0 0.0
    %690 = vmatpush.msra.mxu0 0.0
    %691 = vmatpush.msra.mxu0 0.0
    %692 = vmatpush.msra.mxu0 %v130
    %693 = vmatpush.msra.mxu0 %v129
    %694 = vmatpush.msra.mxu0 %v128
    %695 = vmatpush.msra.mxu0 %v127
    %696 = vmatmul.f32.gmra.mxu0 %v678
    %v697 = vpop.f32.mrf.mxu0
    %v698 = vadd.f32 0.0, %v697
    %699 = vdwg.mxu0
    %v700 = vadd.f32 %v673, %v698
    %v701 = vxor.u32 %v700, 2147483648
    %v702 = vmul.f32 %v701, 1.442695
    %v703 = vpow.pop %v702
    %v704 = vadd.f32 %v703, 1.0
    %v705 = vrcp.pop %v704
    %v706 = vmul.f32 %v704, %v705
    %v707 = vsub.f32 1.0, %v706
    %v708 = vmul.f32 %v705, %v707
    %v709 = vadd.f32 %v705, %v708
    %vm710 = vweird.f32 %v704
    %vm711 = vweird.f32 %v705
    %vm712 = vmor %vm710, %vm711
    %v713 = vsel %vm712, %v705, %v709
    %v714 = vand.u32 2147483647, %v704
    %vm715 = vcmp.eq.f32.partialorder %v714, 8.507059e+37
    %v716 = vand.u32 %v704, 2147483648
    %v717 = vor.u32 1.1754944e-38, %v716
    %v718 = vsel %vm715, %v717, %v713
    %v719 = vmul.f32 1.0, %v718
    %v720 = vadd.f32 %v698, %v316
    %722 = vrot.lane.b32.xlu0 %v720, 64
    %v723 = vpop.permute.xlu0 %722
    %v725 = vmul.f32 %v719, %v723
    %727 = vrot.lane.b32.xlu0 %v725, 64
    %v728 = vpop.permute.xlu0 %727
    %v730 = vadd.f32 %v673, %v728
    %v731 = vtanh.pop %v730
    %v732 = vsub.f32 1.0, %v719
    %734 = vrot.lane.b32.xlu0 %v731, 96
    %v735 = vpop.permute.xlu0 %734
    %v737 = vmul.f32 %v732, %v735
    %v738 = vmul.f32 %v719, %v536
    %v739 = vadd.f32 %v737, %v738
    %740 = vmatpush.msra.mxu0 0.0
    %741 = vmatpush.msra.mxu0 0.0
    %742 = vmatpush.msra.mxu0 0.0
    %743 = vmatpush.msra.mxu0 0.0
    %744 = vmatpush.msra.mxu0 0.0
    %745 = vmatpush.msra.mxu0 0.0
    %746 = vmatpush.msra.mxu0 0.0
    %747 = vmatpush.msra.mxu0 0.0
    %748 = vmatpush.msra.mxu0 0.0
    %749 = vmatpush.msra.mxu0 0.0
    %750 = vmatpush.msra.mxu0 0.0
    %751 = vmatpush.msra.mxu0 0.0
    %752 = vmatpush.msra.mxu0 %v120
    %753 = vmatpush.msra.mxu0 %v119
    %754 = vmatpush.msra.mxu0 %v118
    %755 = vmatpush.msra.mxu0 %v117
    %756 = vmatmul.f32.gmra.mxu0 %v653
    %v757 = vpop.f32.mrf.mxu0
    %v758 = vadd.f32 0.0, %v757
    %759 = vdwg.mxu0
    %v761 = vrot.slane %v758, 5
    %v762 = vrot.slane %v758, 6
    %v765 = vadd.f32 %v112, %v761
    %v766 = vadd.f32 %v115, %v762
    %v767 = vxor.u32 %v765, 2147483648
    %v768 = vxor.u32 %v766, 2147483648
    %v769 = vmul.f32 %v767, 1.442695
    %v770 = vpow.pop %v769
    %v771 = vmul.f32 %v768, 1.442695
    %v772 = vpow.pop %v771
    %v773 = vadd.f32 %v770, 1.0
    %v774 = vadd.f32 %v772, 1.0
    %v775 = vrcp.pop %v773
    %v776 = vmul.f32 %v773, %v775
    %v777 = vsub.f32 1.0, %v776
    %v778 = vmul.f32 %v775, %v777
    %v779 = vadd.f32 %v775, %v778
    %vm780 = vweird.f32 %v773
    %vm781 = vweird.f32 %v775
    %vm782 = vmor %vm780, %vm781
    %v783 = vsel %vm782, %v775, %v779
    %v784 = vand.u32 2147483647, %v773
    %vm785 = vcmp.eq.f32.partialorder %v784, 8.507059e+37
    %v786 = vand.u32 %v773, 2147483648
    %v787 = vor.u32 1.1754944e-38, %v786
    %v788 = vsel %vm785, %v787, %v783
    %v789 = vmul.f32 1.0, %v788
    %v790 = vrcp.pop %v774
    %v791 = vmul.f32 %v774, %v790
    %v792 = vsub.f32 1.0, %v791
    %v793 = vmul.f32 %v790, %v792
    %v794 = vadd.f32 %v790, %v793
    %vm795 = vweird.f32 %v774
    %vm796 = vweird.f32 %v790
    %vm797 = vmor %vm795, %vm796
    %v798 = vsel %vm797, %v790, %v794
    %v799 = vand.u32 2147483647, %v774
    %vm800 = vcmp.eq.f32.partialorder %v799, 8.507059e+37
    %v801 = vand.u32 %v774, 2147483648
    %v802 = vor.u32 1.1754944e-38, %v801
    %v803 = vsel %vm800, %v802, %v798
    %v804 = vmul.f32 1.0, %v803
    %v805 = vadd.f32 %v758, %v204
    %v807 = vrot.slane %v805, 5
    %v808 = vrot.slane %v805, 6
    %809 = vrot.lane.b32.xlu0 %v807, 64
    %v810 = vpop.permute.xlu0 %809
    %811 = vrot.lane.b32.xlu0 %v808, 64
    %v812 = vpop.permute.xlu0 %811
    %v815 = vmul.f32 %v789, %v810
    %v816 = vmul.f32 %v804, %v812
    %819 = vrot.lane.b32.xlu0 %v815, 64
    %v820 = vpop.permute.xlu0 %819
    %821 = vrot.lane.b32.xlu0 %v816, 64
    %v822 = vpop.permute.xlu0 %821
    %v825 = vadd.f32 %v112, %v820
    %v826 = vadd.f32 %v115, %v822
    %v827 = vtanh.pop %v825
    %v828 = vtanh.pop %v826
    %v829 = vsub.f32 1.0, %v789
    %v830 = vsub.f32 1.0, %v804
    %833 = vrot.lane.b32.xlu0 %v827, 96
    %v834 = vpop.permute.xlu0 %833
    %835 = vrot.lane.b32.xlu0 %v828, 96
    %v836 = vpop.permute.xlu0 %835
    %v839 = vmul.f32 %v829, %v834
    %v840 = vmul.f32 %v830, %v836
    %v841 = vrot.slane %v644, 7
    %v842 = vrot.slane %v645, 7
    %v845 = vmul.f32 %v789, %v841
    %v846 = vmul.f32 %v804, %v842
    %v847 = vadd.f32 %v839, %v845
    %v848 = vadd.f32 %v840, %v846
    %v851 = vrot.slane %v847, 3
    %v852 = vrot.slane %v848, 2
    %v853 = vsel %vm249, %v852, %v851
    %854 = vrot.lane.b32.xlu0 %v853, 96
    %v855 = vpop.permute.xlu0 %854
    %v856 = vsel %vm87, %v855, 0
    %858 = vmatpush.msra.mxu0 0.0
    %859 = vmatpush.msra.mxu0 0.0
    %860 = vmatpush.msra.mxu0 0.0
    %861 = vmatpush.msra.mxu0 0.0
    %862 = vmatpush.msra.mxu0 0.0
    %863 = vmatpush.msra.mxu0 0.0
    %864 = vmatpush.msra.mxu0 0.0
    %865 = vmatpush.msra.mxu0 0.0
    %866 = vmatpush.msra.mxu0 0.0
    %867 = vmatpush.msra.mxu0 0.0
    %868 = vmatpush.msra.mxu0 0.0
    %869 = vmatpush.msra.mxu0 0.0
    %870 = vmatpush.msra.mxu0 %v125
    %871 = vmatpush.msra.mxu0 %v124
    %872 = vmatpush.msra.mxu0 %v123
    %873 = vmatpush.msra.mxu0 %v122
    %874 = vmatmul.f32.gmra.mxu0 %v856
    %v875 = vpop.f32.mrf.mxu0
    %v876 = vadd.f32 %v245, %v875
    %877 = vdwg.mxu0
    %879 = vrot.lane.b32.xlu0 %v739, 96
    %v880 = vpop.permute.xlu0 %879
    %v881 = vsel %vm87, %v880, 0
    %883 = vmatpush.msra.mxu0 0.0
    %884 = vmatpush.msra.mxu0 0.0
    %885 = vmatpush.msra.mxu0 0.0
    %886 = vmatpush.msra.mxu0 0.0
    %887 = vmatpush.msra.mxu0 0.0
    %888 = vmatpush.msra.mxu0 0.0
    %889 = vmatpush.msra.mxu0 0.0
    %890 = vmatpush.msra.mxu0 0.0
    %891 = vmatpush.msra.mxu0 0.0
    %892 = vmatpush.msra.mxu0 0.0
    %893 = vmatpush.msra.mxu0 0.0
    %894 = vmatpush.msra.mxu0 0.0
    %895 = vmatpush.msra.mxu0 %v130
    %896 = vmatpush.msra.mxu0 %v129
    %897 = vmatpush.msra.mxu0 %v128
    %898 = vmatpush.msra.mxu0 %v127
    %899 = vmatmul.f32.gmra.mxu0 %v881
    %v900 = vpop.f32.mrf.mxu0
    %v901 = vadd.f32 0.0, %v900
    %902 = vdwg.mxu0
    %v903 = vadd.f32 %v876, %v901
    %v904 = vxor.u32 %v903, 2147483648
    %v905 = vmul.f32 %v904, 1.442695
    %v906 = vpow.pop %v905
    %v907 = vadd.f32 %v906, 1.0
    %v908 = vrcp.pop %v907
    %v909 = vmul.f32 %v907, %v908
    %v910 = vsub.f32 1.0, %v909
    %v911 = vmul.f32 %v908, %v910
    %v912 = vadd.f32 %v908, %v911
    %vm913 = vweird.f32 %v907
    %vm914 = vweird.f32 %v908
    %vm915 = vmor %vm913, %vm914
    %v916 = vsel %vm915, %v908, %v912
    %v917 = vand.u32 2147483647, %v907
    %vm918 = vcmp.eq.f32.partialorder %v917, 8.507059e+37
    %v919 = vand.u32 %v907, 2147483648
    %v920 = vor.u32 1.1754944e-38, %v919
    %v921 = vsel %vm918, %v920, %v916
    %v922 = vmul.f32 1.0, %v921
    %v923 = vadd.f32 %v901, %v316
    %925 = vrot.lane.b32.xlu0 %v923, 64
    %v926 = vpop.permute.xlu0 %925
    %v928 = vmul.f32 %v922, %v926
    %930 = vrot.lane.b32.xlu0 %v928, 64
    %v931 = vpop.permute.xlu0 %930
    %v933 = vadd.f32 %v876, %v931
    %v934 = vtanh.pop %v933
    %v935 = vsub.f32 1.0, %v922
    %937 = vrot.lane.b32.xlu0 %v934, 96
    %v938 = vpop.permute.xlu0 %937
    %v940 = vmul.f32 %v935, %v938
    %v941 = vmul.f32 %v922, %v739
    %v942 = vadd.f32 %v940, %v941
    %943 = vmatpush.msra.mxu0 0.0
    %944 = vmatpush.msra.mxu0 0.0
    %945 = vmatpush.msra.mxu0 0.0
    %946 = vmatpush.msra.mxu0 0.0
    %947 = vmatpush.msra.mxu0 0.0
    %948 = vmatpush.msra.mxu0 0.0
    %949 = vmatpush.msra.mxu0 0.0
    %950 = vmatpush.msra.mxu0 0.0
    %951 = vmatpush.msra.mxu0 0.0
    %952 = vmatpush.msra.mxu0 0.0
    %953 = vmatpush.msra.mxu0 0.0
    %954 = vmatpush.msra.mxu0 0.0
    %955 = vmatpush.msra.mxu0 %v120
    %956 = vmatpush.msra.mxu0 %v119
    %957 = vmatpush.msra.mxu0 %v118
    %958 = vmatpush.msra.mxu0 %v117
    %959 = vmatmul.f32.gmra.mxu0 %v856
    %v960 = vpop.f32.mrf.mxu0
    %v961 = vadd.f32 0.0, %v960
    %962 = vdwg.mxu0
    %v964 = vrot.slane %v961, 4
    %v965 = vrot.slane %v961, 5
    %v968 = vadd.f32 %v112, %v964
    %v969 = vadd.f32 %v115, %v965
    %v970 = vxor.u32 %v968, 2147483648
    %v971 = vxor.u32 %v969, 2147483648
    %v972 = vmul.f32 %v970, 1.442695
    %v973 = vpow.pop %v972
    %v974 = vmul.f32 %v971, 1.442695
    %v975 = vpow.pop %v974
    %v976 = vadd.f32 %v973, 1.0
    %v977 = vadd.f32 %v975, 1.0
    %v978 = vrcp.pop %v976
    %v979 = vmul.f32 %v976, %v978
    %v980 = vsub.f32 1.0, %v979
    %v981 = vmul.f32 %v978, %v980
    %v982 = vadd.f32 %v978, %v981
    %vm983 = vweird.f32 %v976
    %vm984 = vweird.f32 %v978
    %vm985 = vmor %vm983, %vm984
    %v986 = vsel %vm985, %v978, %v982
    %v987 = vand.u32 2147483647, %v976
    %vm988 = vcmp.eq.f32.partialorder %v987, 8.507059e+37
    %v989 = vand.u32 %v976, 2147483648
    %v990 = vor.u32 1.1754944e-38, %v989
    %v991 = vsel %vm988, %v990, %v986
    %v992 = vmul.f32 1.0, %v991
    %v993 = vrcp.pop %v977
    %v994 = vmul.f32 %v977, %v993
    %v995 = vsub.f32 1.0, %v994
    %v996 = vmul.f32 %v993, %v995
    %v997 = vadd.f32 %v993, %v996
    %vm998 = vweird.f32 %v977
    %vm999 = vweird.f32 %v993
    %vm1000 = vmor %vm998, %vm999
    %v1001 = vsel %vm1000, %v993, %v997
    %v1002 = vand.u32 2147483647, %v977
    %vm1003 = vcmp.eq.f32.partialorder %v1002, 8.507059e+37
    %v1004 = vand.u32 %v977, 2147483648
    %v1005 = vor.u32 1.1754944e-38, %v1004
    %v1006 = vsel %vm1003, %v1005, %v1001
    %v1007 = vmul.f32 1.0, %v1006
    %v1008 = vadd.f32 %v961, %v204
    %v1010 = vrot.slane %v1008, 4
    %v1011 = vrot.slane %v1008, 5
    %1012 = vrot.lane.b32.xlu0 %v1010, 64
    %v1013 = vpop.permute.xlu0 %1012
    %1014 = vrot.lane.b32.xlu0 %v1011, 64
    %v1015 = vpop.permute.xlu0 %1014
    %v1018 = vmul.f32 %v992, %v1013
    %v1019 = vmul.f32 %v1007, %v1015
    %1022 = vrot.lane.b32.xlu0 %v1018, 64
    %v1023 = vpop.permute.xlu0 %1022
    %1024 = vrot.lane.b32.xlu0 %v1019, 64
    %v1025 = vpop.permute.xlu0 %1024
    %v1028 = vadd.f32 %v112, %v1023
    %v1029 = vadd.f32 %v115, %v1025
    %v1030 = vtanh.pop %v1028
    %v1031 = vtanh.pop %v1029
    %v1032 = vsub.f32 1.0, %v992
    %v1033 = vsub.f32 1.0, %v1007
    %1036 = vrot.lane.b32.xlu0 %v1030, 96
    %v1037 = vpop.permute.xlu0 %1036
    %1038 = vrot.lane.b32.xlu0 %v1031, 96
    %v1039 = vpop.permute.xlu0 %1038
    %v1042 = vmul.f32 %v1032, %v1037
    %v1043 = vmul.f32 %v1033, %v1039
    %v1044 = vrot.slane %v847, 7
    %v1045 = vrot.slane %v848, 7
    %v1048 = vmul.f32 %v992, %v1044
    %v1049 = vmul.f32 %v1007, %v1045
    %v1050 = vadd.f32 %v1042, %v1048
    %v1051 = vadd.f32 %v1043, %v1049
    %v1054 = vrot.slane %v1050, 4
    %v1055 = vrot.slane %v1051, 3
    %v1056 = vsel %vm249, %v1055, %v1054
    %1057 = vrot.lane.b32.xlu0 %v1056, 96
    %v1058 = vpop.permute.xlu0 %1057
    %v1059 = vsel %vm87, %v1058, 0
    %1061 = vmatpush.msra.mxu0 0.0
    %1062 = vmatpush.msra.mxu0 0.0
    %1063 = vmatpush.msra.mxu0 0.0
    %1064 = vmatpush.msra.mxu0 0.0
    %1065 = vmatpush.msra.mxu0 0.0
    %1066 = vmatpush.msra.mxu0 0.0
    %1067 = vmatpush.msra.mxu0 0.0
    %1068 = vmatpush.msra.mxu0 0.0
    %1069 = vmatpush.msra.mxu0 0.0
    %1070 = vmatpush.msra.mxu0 0.0
    %1071 = vmatpush.msra.mxu0 0.0
    %1072 = vmatpush.msra.mxu0 0.0
    %1073 = vmatpush.msra.mxu0 %v125
    %1074 = vmatpush.msra.mxu0 %v124
    %1075 = vmatpush.msra.mxu0 %v123
    %1076 = vmatpush.msra.mxu0 %v122
    %1077 = vmatmul.f32.gmra.mxu0 %v1059
    %v1078 = vpop.f32.mrf.mxu0
    %v1079 = vadd.f32 %v245, %v1078
    %1080 = vdwg.mxu0
    %1082 = vrot.lane.b32.xlu0 %v942, 96
    %v1083 = vpop.permute.xlu0 %1082
    %v1084 = vsel %vm87, %v1083, 0
    %1086 = vmatpush.msra.mxu0 0.0
    %1087 = vmatpush.msra.mxu0 0.0
    %1088 = vmatpush.msra.mxu0 0.0
    %1089 = vmatpush.msra.mxu0 0.0
    %1090 = vmatpush.msra.mxu0 0.0
    %1091 = vmatpush.msra.mxu0 0.0
    %1092 = vmatpush.msra.mxu0 0.0
    %1093 = vmatpush.msra.mxu0 0.0
    %1094 = vmatpush.msra.mxu0 0.0
    %1095 = vmatpush.msra.mxu0 0.0
    %1096 = vmatpush.msra.mxu0 0.0
    %1097 = vmatpush.msra.mxu0 0.0
    %1098 = vmatpush.msra.mxu0 %v130
    %1099 = vmatpush.msra.mxu0 %v129
    %1100 = vmatpush.msra.mxu0 %v128
    %1101 = vmatpush.msra.mxu0 %v127
    %1102 = vmatmul.f32.gmra.mxu0 %v1084
    %v1103 = vpop.f32.mrf.mxu0
    %v1104 = vadd.f32 0.0, %v1103
    %1105 = vdwg.mxu0
    %v1106 = vadd.f32 %v1079, %v1104
    %v1107 = vxor.u32 %v1106, 2147483648
    %v1108 = vmul.f32 %v1107, 1.442695
    %v1109 = vpow.pop %v1108
    %v1110 = vadd.f32 %v1109, 1.0
    %v1111 = vrcp.pop %v1110
    %v1112 = vmul.f32 %v1110, %v1111
    %v1113 = vsub.f32 1.0, %v1112
    %v1114 = vmul.f32 %v1111, %v1113
    %v1115 = vadd.f32 %v1111, %v1114
    %vm1116 = vweird.f32 %v1110
    %vm1117 = vweird.f32 %v1111
    %vm1118 = vmor %vm1116, %vm1117
    %v1119 = vsel %vm1118, %v1111, %v1115
    %v1120 = vand.u32 2147483647, %v1110
    %vm1121 = vcmp.eq.f32.partialorder %v1120, 8.507059e+37
    %v1122 = vand.u32 %v1110, 2147483648
    %v1123 = vor.u32 1.1754944e-38, %v1122
    %v1124 = vsel %vm1121, %v1123, %v1119
    %v1125 = vmul.f32 1.0, %v1124
    %v1126 = vadd.f32 %v1104, %v316
    %1128 = vrot.lane.b32.xlu0 %v1126, 64
    %v1129 = vpop.permute.xlu0 %1128
    %v1131 = vmul.f32 %v1125, %v1129
    %1133 = vrot.lane.b32.xlu0 %v1131, 64
    %v1134 = vpop.permute.xlu0 %1133
    %v1136 = vadd.f32 %v1079, %v1134
    %v1137 = vtanh.pop %v1136
    %v1138 = vsub.f32 1.0, %v1125
    %1140 = vrot.lane.b32.xlu0 %v1137, 96
    %v1141 = vpop.permute.xlu0 %1140
    %v1143 = vmul.f32 %v1138, %v1141
    %v1144 = vmul.f32 %v1125, %v942
    %v1145 = vadd.f32 %v1143, %v1144
    %1146 = vmatpush.msra.mxu0 0.0
    %1147 = vmatpush.msra.mxu0 0.0
    %1148 = vmatpush.msra.mxu0 0.0
    %1149 = vmatpush.msra.mxu0 0.0
    %1150 = vmatpush.msra.mxu0 0.0
    %1151 = vmatpush.msra.mxu0 0.0
    %1152 = vmatpush.msra.mxu0 0.0
    %1153 = vmatpush.msra.mxu0 0.0
    %1154 = vmatpush.msra.mxu0 0.0
    %1155 = vmatpush.msra.mxu0 0.0
    %1156 = vmatpush.msra.mxu0 0.0
    %1157 = vmatpush.msra.mxu0 0.0
    %1158 = vmatpush.msra.mxu0 %v120
    %1159 = vmatpush.msra.mxu0 %v119
    %1160 = vmatpush.msra.mxu0 %v118
    %1161 = vmatpush.msra.mxu0 %v117
    %1162 = vmatmul.f32.gmra.mxu0 %v1059
    %v1163 = vpop.f32.mrf.mxu0
    %v1164 = vadd.f32 0.0, %v1163
    %1165 = vdwg.mxu0
    %v1167 = vrot.slane %v1164, 3
    %v1168 = vrot.slane %v1164, 4
    %v1171 = vadd.f32 %v112, %v1167
    %v1172 = vadd.f32 %v115, %v1168
    %v1173 = vxor.u32 %v1171, 2147483648
    %v1174 = vxor.u32 %v1172, 2147483648
    %v1175 = vmul.f32 %v1173, 1.442695
    %v1176 = vpow.pop %v1175
    %v1177 = vmul.f32 %v1174, 1.442695
    %v1178 = vpow.pop %v1177
    %v1179 = vadd.f32 %v1176, 1.0
    %v1180 = vadd.f32 %v1178, 1.0
    %v1181 = vrcp.pop %v1179
    %v1182 = vmul.f32 %v1179, %v1181
    %v1183 = vsub.f32 1.0, %v1182
    %v1184 = vmul.f32 %v1181, %v1183
    %v1185 = vadd.f32 %v1181, %v1184
    %vm1186 = vweird.f32 %v1179
    %vm1187 = vweird.f32 %v1181
    %vm1188 = vmor %vm1186, %vm1187
    %v1189 = vsel %vm1188, %v1181, %v1185
    %v1190 = vand.u32 2147483647, %v1179
    %vm1191 = vcmp.eq.f32.partialorder %v1190, 8.507059e+37
    %v1192 = vand.u32 %v1179, 2147483648
    %v1193 = vor.u32 1.1754944e-38, %v1192
    %v1194 = vsel %vm1191, %v1193, %v1189
    %v1195 = vmul.f32 1.0, %v1194
    %v1196 = vrcp.pop %v1180
    %v1197 = vmul.f32 %v1180, %v1196
    %v1198 = vsub.f32 1.0, %v1197
    %v1199 = vmul.f32 %v1196, %v1198
    %v1200 = vadd.f32 %v1196, %v1199
    %vm1201 = vweird.f32 %v1180
    %vm1202 = vweird.f32 %v1196
    %vm1203 = vmor %vm1201, %vm1202
    %v1204 = vsel %vm1203, %v1196, %v1200
    %v1205 = vand.u32 2147483647, %v1180
    %vm1206 = vcmp.eq.f32.partialorder %v1205, 8.507059e+37
    %v1207 = vand.u32 %v1180, 2147483648
    %v1208 = vor.u32 1.1754944e-38, %v1207
    %v1209 = vsel %vm1206, %v1208, %v1204
    %v1210 = vmul.f32 1.0, %v1209
    %v1211 = vadd.f32 %v1164, %v204
    %v1213 = vrot.slane %v1211, 3
    %v1214 = vrot.slane %v1211, 4
    %1215 = vrot.lane.b32.xlu0 %v1213, 64
    %v1216 = vpop.permute.xlu0 %1215
    %1217 = vrot.lane.b32.xlu0 %v1214, 64
    %v1218 = vpop.permute.xlu0 %1217
    %v1221 = vmul.f32 %v1195, %v1216
    %v1222 = vmul.f32 %v1210, %v1218
    %1225 = vrot.lane.b32.xlu0 %v1221, 64
    %v1226 = vpop.permute.xlu0 %1225
    %1227 = vrot.lane.b32.xlu0 %v1222, 64
    %v1228 = vpop.permute.xlu0 %1227
    %v1231 = vadd.f32 %v112, %v1226
    %v1232 = vadd.f32 %v115, %v1228
    %v1233 = vtanh.pop %v1231
    %v1234 = vtanh.pop %v1232
    %v1235 = vsub.f32 1.0, %v1195
    %v1236 = vsub.f32 1.0, %v1210
    %1239 = vrot.lane.b32.xlu0 %v1233, 96
    %v1240 = vpop.permute.xlu0 %1239
    %1241 = vrot.lane.b32.xlu0 %v1234, 96
    %v1242 = vpop.permute.xlu0 %1241
    %v1245 = vmul.f32 %v1235, %v1240
    %v1246 = vmul.f32 %v1236, %v1242
    %v1247 = vrot.slane %v1050, 7
    %v1248 = vrot.slane %v1051, 7
    %v1251 = vmul.f32 %v1195, %v1247
    %v1252 = vmul.f32 %v1210, %v1248
    %v1253 = vadd.f32 %v1245, %v1251
    %v1254 = vadd.f32 %v1246, %v1252
    %v1257 = vrot.slane %v1253, 5
    %v1258 = vrot.slane %v1254, 4
    %v1259 = vsel %vm249, %v1258, %v1257
    %1260 = vrot.lane.b32.xlu0 %v1259, 96
    %v1261 = vpop.permute.xlu0 %1260
    %v1262 = vsel %vm87, %v1261, 0
    %1264 = vmatpush.msra.mxu0 0.0
    %1265 = vmatpush.msra.mxu0 0.0
    %1266 = vmatpush.msra.mxu0 0.0
    %1267 = vmatpush.msra.mxu0 0.0
    %1268 = vmatpush.msra.mxu0 0.0
    %1269 = vmatpush.msra.mxu0 0.0
    %1270 = vmatpush.msra.mxu0 0.0
    %1271 = vmatpush.msra.mxu0 0.0
    %1272 = vmatpush.msra.mxu0 0.0
    %1273 = vmatpush.msra.mxu0 0.0
    %1274 = vmatpush.msra.mxu0 0.0
    %1275 = vmatpush.msra.mxu0 0.0
    %1276 = vmatpush.msra.mxu0 %v125
    %1277 = vmatpush.msra.mxu0 %v124
    %1278 = vmatpush.msra.mxu0 %v123
    %1279 = vmatpush.msra.mxu0 %v122
    %1280 = vmatmul.f32.gmra.mxu0 %v1262
    %v1281 = vpop.f32.mrf.mxu0
    %v1282 = vadd.f32 %v245, %v1281
    %1283 = vdwg.mxu0
    %1285 = vrot.lane.b32.xlu0 %v1145, 96
    %v1286 = vpop.permute.xlu0 %1285
    %v1287 = vsel %vm87, %v1286, 0
    %1289 = vmatpush.msra.mxu0 0.0
    %1290 = vmatpush.msra.mxu0 0.0
    %1291 = vmatpush.msra.mxu0 0.0
    %1292 = vmatpush.msra.mxu0 0.0
    %1293 = vmatpush.msra.mxu0 0.0
    %1294 = vmatpush.msra.mxu0 0.0
    %1295 = vmatpush.msra.mxu0 0.0
    %1296 = vmatpush.msra.mxu0 0.0
    %1297 = vmatpush.msra.mxu0 0.0
    %1298 = vmatpush.msra.mxu0 0.0
    %1299 = vmatpush.msra.mxu0 0.0
    %1300 = vmatpush.msra.mxu0 0.0
    %1301 = vmatpush.msra.mxu0 %v130
    %1302 = vmatpush.msra.mxu0 %v129
    %1303 = vmatpush.msra.mxu0 %v128
    %1304 = vmatpush.msra.mxu0 %v127
    %1305 = vmatmul.f32.gmra.mxu0 %v1287
    %v1306 = vpop.f32.mrf.mxu0
    %v1307 = vadd.f32 0.0, %v1306
    %1308 = vdwg.mxu0
    %v1309 = vadd.f32 %v1282, %v1307
    %v1310 = vxor.u32 %v1309, 2147483648
    %v1311 = vmul.f32 %v1310, 1.442695
    %v1312 = vpow.pop %v1311
    %v1313 = vadd.f32 %v1312, 1.0
    %v1314 = vrcp.pop %v1313
    %v1315 = vmul.f32 %v1313, %v1314
    %v1316 = vsub.f32 1.0, %v1315
    %v1317 = vmul.f32 %v1314, %v1316
    %v1318 = vadd.f32 %v1314, %v1317
    %vm1319 = vweird.f32 %v1313
    %vm1320 = vweird.f32 %v1314
    %vm1321 = vmor %vm1319, %vm1320
    %v1322 = vsel %vm1321, %v1314, %v1318
    %v1323 = vand.u32 2147483647, %v1313
    %vm1324 = vcmp.eq.f32.partialorder %v1323, 8.507059e+37
    %v1325 = vand.u32 %v1313, 2147483648
    %v1326 = vor.u32 1.1754944e-38, %v1325
    %v1327 = vsel %vm1324, %v1326, %v1322
    %v1328 = vmul.f32 1.0, %v1327
    %v1329 = vadd.f32 %v1307, %v316
    %1331 = vrot.lane.b32.xlu0 %v1329, 64
    %v1332 = vpop.permute.xlu0 %1331
    %v1334 = vmul.f32 %v1328, %v1332
    %1336 = vrot.lane.b32.xlu0 %v1334, 64
    %v1337 = vpop.permute.xlu0 %1336
    %v1339 = vadd.f32 %v1282, %v1337
    %v1340 = vtanh.pop %v1339
    %v1341 = vsub.f32 1.0, %v1328
    %1343 = vrot.lane.b32.xlu0 %v1340, 96
    %v1344 = vpop.permute.xlu0 %1343
    %v1346 = vmul.f32 %v1341, %v1344
    %v1347 = vmul.f32 %v1328, %v1145
    %v1348 = vadd.f32 %v1346, %v1347
    %1349 = vmatpush.msra.mxu0 0.0
    %1350 = vmatpush.msra.mxu0 0.0
    %1351 = vmatpush.msra.mxu0 0.0
    %1352 = vmatpush.msra.mxu0 0.0
    %1353 = vmatpush.msra.mxu0 0.0
    %1354 = vmatpush.msra.mxu0 0.0
    %1355 = vmatpush.msra.mxu0 0.0
    %1356 = vmatpush.msra.mxu0 0.0
    %1357 = vmatpush.msra.mxu0 0.0
    %1358 = vmatpush.msra.mxu0 0.0
    %1359 = vmatpush.msra.mxu0 0.0
    %1360 = vmatpush.msra.mxu0 0.0
    %1361 = vmatpush.msra.mxu0 %v120
    %1362 = vmatpush.msra.mxu0 %v119
    %1363 = vmatpush.msra.mxu0 %v118
    %1364 = vmatpush.msra.mxu0 %v117
    %1365 = vmatmul.f32.gmra.mxu0 %v1262
    %v1366 = vpop.f32.mrf.mxu0
    %v1367 = vadd.f32 0.0, %v1366
    %1368 = vdwg.mxu0
    %v1370 = vrot.slane %v1367, 2
    %v1371 = vrot.slane %v1367, 3
    %v1374 = vadd.f32 %v112, %v1370
    %v1375 = vadd.f32 %v115, %v1371
    %v1376 = vxor.u32 %v1374, 2147483648
    %v1377 = vxor.u32 %v1375, 2147483648
    %v1378 = vmul.f32 %v1376, 1.442695
    %v1379 = vpow.pop %v1378
    %v1380 = vmul.f32 %v1377, 1.442695
    %v1381 = vpow.pop %v1380
    %v1382 = vadd.f32 %v1379, 1.0
    %v1383 = vadd.f32 %v1381, 1.0
    %v1384 = vrcp.pop %v1382
    %v1385 = vmul.f32 %v1382, %v1384
    %v1386 = vsub.f32 1.0, %v1385
    %v1387 = vmul.f32 %v1384, %v1386
    %v1388 = vadd.f32 %v1384, %v1387
    %vm1389 = vweird.f32 %v1382
    %vm1390 = vweird.f32 %v1384
    %vm1391 = vmor %vm1389, %vm1390
    %v1392 = vsel %vm1391, %v1384, %v1388
    %v1393 = vand.u32 2147483647, %v1382
    %vm1394 = vcmp.eq.f32.partialorder %v1393, 8.507059e+37
    %v1395 = vand.u32 %v1382, 2147483648
    %v1396 = vor.u32 1.1754944e-38, %v1395
    %v1397 = vsel %vm1394, %v1396, %v1392
    %v1398 = vmul.f32 1.0, %v1397
    %v1399 = vrcp.pop %v1383
    %v1400 = vmul.f32 %v1383, %v1399
    %v1401 = vsub.f32 1.0, %v1400
    %v1402 = vmul.f32 %v1399, %v1401
    %v1403 = vadd.f32 %v1399, %v1402
    %vm1404 = vweird.f32 %v1383
    %vm1405 = vweird.f32 %v1399
    %vm1406 = vmor %vm1404, %vm1405
    %v1407 = vsel %vm1406, %v1399, %v1403
    %v1408 = vand.u32 2147483647, %v1383
    %vm1409 = vcmp.eq.f32.partialorder %v1408, 8.507059e+37
    %v1410 = vand.u32 %v1383, 2147483648
    %v1411 = vor.u32 1.1754944e-38, %v1410
    %v1412 = vsel %vm1409, %v1411, %v1407
    %v1413 = vmul.f32 1.0, %v1412
    %v1414 = vadd.f32 %v1367, %v204
    %v1416 = vrot.slane %v1414, 2
    %v1417 = vrot.slane %v1414, 3
    %1418 = vrot.lane.b32.xlu0 %v1416, 64
    %v1419 = vpop.permute.xlu0 %1418
    %1420 = vrot.lane.b32.xlu0 %v1417, 64
    %v1421 = vpop.permute.xlu0 %1420
    %v1424 = vmul.f32 %v1398, %v1419
    %v1425 = vmul.f32 %v1413, %v1421
    %1428 = vrot.lane.b32.xlu0 %v1424, 64
    %v1429 = vpop.permute.xlu0 %1428
    %1430 = vrot.lane.b32.xlu0 %v1425, 64
    %v1431 = vpop.permute.xlu0 %1430
    %v1434 = vadd.f32 %v112, %v1429
    %v1435 = vadd.f32 %v115, %v1431
    %v1436 = vtanh.pop %v1434
    %v1437 = vtanh.pop %v1435
    %v1438 = vsub.f32 1.0, %v1398
    %v1439 = vsub.f32 1.0, %v1413
    %1442 = vrot.lane.b32.xlu0 %v1436, 96
    %v1443 = vpop.permute.xlu0 %1442
    %1444 = vrot.lane.b32.xlu0 %v1437, 96
    %v1445 = vpop.permute.xlu0 %1444
    %v1448 = vmul.f32 %v1438, %v1443
    %v1449 = vmul.f32 %v1439, %v1445
    %v1450 = vrot.slane %v1253, 7
    %v1451 = vrot.slane %v1254, 7
    %v1454 = vmul.f32 %v1398, %v1450
    %v1455 = vmul.f32 %v1413, %v1451
    %v1456 = vadd.f32 %v1448, %v1454
    %v1457 = vadd.f32 %v1449, %v1455
    %v1460 = vrot.slane %v1456, 6
    %v1461 = vrot.slane %v1457, 5
    %v1462 = vsel %vm249, %v1461, %v1460
    %1463 = vrot.lane.b32.xlu0 %v1462, 96
    %v1464 = vpop.permute.xlu0 %1463
    %v1465 = vsel %vm87, %v1464, 0
    %1467 = vmatpush.msra.mxu0 0.0
    %1468 = vmatpush.msra.mxu0 0.0
    %1469 = vmatpush.msra.mxu0 0.0
    %1470 = vmatpush.msra.mxu0 0.0
    %1471 = vmatpush.msra.mxu0 0.0
    %1472 = vmatpush.msra.mxu0 0.0
    %1473 = vmatpush.msra.mxu0 0.0
    %1474 = vmatpush.msra.mxu0 0.0
    %1475 = vmatpush.msra.mxu0 0.0
    %1476 = vmatpush.msra.mxu0 0.0
    %1477 = vmatpush.msra.mxu0 0.0
    %1478 = vmatpush.msra.mxu0 0.0
    %1479 = vmatpush.msra.mxu0 %v125
    %1480 = vmatpush.msra.mxu0 %v124
    %1481 = vmatpush.msra.mxu0 %v123
    %1482 = vmatpush.msra.mxu0 %v122
    %1483 = vmatmul.f32.gmra.mxu0 %v1465
    %v1484 = vpop.f32.mrf.mxu0
    %v1485 = vadd.f32 %v245, %v1484
    %1486 = vdwg.mxu0
    %1488 = vrot.lane.b32.xlu0 %v1348, 96
    %v1489 = vpop.permute.xlu0 %1488
    %v1490 = vsel %vm87, %v1489, 0
    %1492 = vmatpush.msra.mxu0 0.0
    %1493 = vmatpush.msra.mxu0 0.0
    %1494 = vmatpush.msra.mxu0 0.0
    %1495 = vmatpush.msra.mxu0 0.0
    %1496 = vmatpush.msra.mxu0 0.0
    %1497 = vmatpush.msra.mxu0 0.0
    %1498 = vmatpush.msra.mxu0 0.0
    %1499 = vmatpush.msra.mxu0 0.0
    %1500 = vmatpush.msra.mxu0 0.0
    %1501 = vmatpush.msra.mxu0 0.0
    %1502 = vmatpush.msra.mxu0 0.0
    %1503 = vmatpush.msra.mxu0 0.0
    %1504 = vmatpush.msra.mxu0 %v130
    %1505 = vmatpush.msra.mxu0 %v129
    %1506 = vmatpush.msra.mxu0 %v128
    %1507 = vmatpush.msra.mxu0 %v127
    %1508 = vmatmul.f32.gmra.mxu0 %v1490
    %v1509 = vpop.f32.mrf.mxu0
    %v1510 = vadd.f32 0.0, %v1509
    %1511 = vdwg.mxu0
    %v1512 = vadd.f32 %v1485, %v1510
    %v1513 = vxor.u32 %v1512, 2147483648
    %v1514 = vmul.f32 %v1513, 1.442695
    %v1515 = vpow.pop %v1514
    %v1516 = vadd.f32 %v1515, 1.0
    %v1517 = vrcp.pop %v1516
    %v1518 = vmul.f32 %v1516, %v1517
    %v1519 = vsub.f32 1.0, %v1518
    %v1520 = vmul.f32 %v1517, %v1519
    %v1521 = vadd.f32 %v1517, %v1520
    %vm1522 = vweird.f32 %v1516
    %vm1523 = vweird.f32 %v1517
    %vm1524 = vmor %vm1522, %vm1523
    %v1525 = vsel %vm1524, %v1517, %v1521
    %v1526 = vand.u32 2147483647, %v1516
    %vm1527 = vcmp.eq.f32.partialorder %v1526, 8.507059e+37
    %v1528 = vand.u32 %v1516, 2147483648
    %v1529 = vor.u32 1.1754944e-38, %v1528
    %v1530 = vsel %vm1527, %v1529, %v1525
    %v1531 = vmul.f32 1.0, %v1530
    %v1532 = vadd.f32 %v1510, %v316
    %1534 = vrot.lane.b32.xlu0 %v1532, 64
    %v1535 = vpop.permute.xlu0 %1534
    %v1537 = vmul.f32 %v1531, %v1535
    %1539 = vrot.lane.b32.xlu0 %v1537, 64
    %v1540 = vpop.permute.xlu0 %1539
    %v1542 = vadd.f32 %v1485, %v1540
    %v1543 = vtanh.pop %v1542
    %v1544 = vsub.f32 1.0, %v1531
    %1546 = vrot.lane.b32.xlu0 %v1543, 96
    %v1547 = vpop.permute.xlu0 %1546
    %v1549 = vmul.f32 %v1544, %v1547
    %v1550 = vmul.f32 %v1531, %v1348
    %v1551 = vadd.f32 %v1549, %v1550
    %1552 = vmatpush.msra.mxu0 0.0
    %1553 = vmatpush.msra.mxu0 0.0
    %1554 = vmatpush.msra.mxu0 0.0
    %1555 = vmatpush.msra.mxu0 0.0
    %1556 = vmatpush.msra.mxu0 0.0
    %1557 = vmatpush.msra.mxu0 0.0
    %1558 = vmatpush.msra.mxu0 0.0
    %1559 = vmatpush.msra.mxu0 0.0
    %1560 = vmatpush.msra.mxu0 0.0
    %1561 = vmatpush.msra.mxu0 0.0
    %1562 = vmatpush.msra.mxu0 0.0
    %1563 = vmatpush.msra.mxu0 0.0
    %1564 = vmatpush.msra.mxu0 %v120
    %1565 = vmatpush.msra.mxu0 %v119
    %1566 = vmatpush.msra.mxu0 %v118
    %1567 = vmatpush.msra.mxu0 %v117
    %1568 = vmatmul.f32.gmra.mxu0 %v1465
    %v1569 = vpop.f32.mrf.mxu0
    %v1570 = vadd.f32 0.0, %v1569
    %1571 = vdwg.mxu0
    %v1573 = vrot.slane %v1570, 1
    %v1574 = vrot.slane %v1570, 2
    %v1577 = vadd.f32 %v112, %v1573
    %v1578 = vadd.f32 %v115, %v1574
    %v1579 = vxor.u32 %v1577, 2147483648
    %v1580 = vxor.u32 %v1578, 2147483648
    %v1581 = vmul.f32 %v1579, 1.442695
    %v1582 = vpow.pop %v1581
    %v1583 = vmul.f32 %v1580, 1.442695
    %v1584 = vpow.pop %v1583
    %v1585 = vadd.f32 %v1582, 1.0
    %v1586 = vadd.f32 %v1584, 1.0
    %v1587 = vrcp.pop %v1585
    %v1588 = vmul.f32 %v1585, %v1587
    %v1589 = vsub.f32 1.0, %v1588
    %v1590 = vmul.f32 %v1587, %v1589
    %v1591 = vadd.f32 %v1587, %v1590
    %vm1592 = vweird.f32 %v1585
    %vm1593 = vweird.f32 %v1587
    %vm1594 = vmor %vm1592, %vm1593
    %v1595 = vsel %vm1594, %v1587, %v1591
    %v1596 = vand.u32 2147483647, %v1585
    %vm1597 = vcmp.eq.f32.partialorder %v1596, 8.507059e+37
    %v1598 = vand.u32 %v1585, 2147483648
    %v1599 = vor.u32 1.1754944e-38, %v1598
    %v1600 = vsel %vm1597, %v1599, %v1595
    %v1601 = vmul.f32 1.0, %v1600
    %v1602 = vrcp.pop %v1586
    %v1603 = vmul.f32 %v1586, %v1602
    %v1604 = vsub.f32 1.0, %v1603
    %v1605 = vmul.f32 %v1602, %v1604
    %v1606 = vadd.f32 %v1602, %v1605
    %vm1607 = vweird.f32 %v1586
    %vm1608 = vweird.f32 %v1602
    %vm1609 = vmor %vm1607, %vm1608
    %v1610 = vsel %vm1609, %v1602, %v1606
    %v1611 = vand.u32 2147483647, %v1586
    %vm1612 = vcmp.eq.f32.partialorder %v1611, 8.507059e+37
    %v1613 = vand.u32 %v1586, 2147483648
    %v1614 = vor.u32 1.1754944e-38, %v1613
    %v1615 = vsel %vm1612, %v1614, %v1610
    %v1616 = vmul.f32 1.0, %v1615
    %v1617 = vadd.f32 %v1570, %v204
    %v1619 = vrot.slane %v1617, 1
    %v1620 = vrot.slane %v1617, 2
    %1621 = vrot.lane.b32.xlu0 %v1619, 64
    %v1622 = vpop.permute.xlu0 %1621
    %1623 = vrot.lane.b32.xlu0 %v1620, 64
    %v1624 = vpop.permute.xlu0 %1623
    %v1627 = vmul.f32 %v1601, %v1622
    %v1628 = vmul.f32 %v1616, %v1624
    %1631 = vrot.lane.b32.xlu0 %v1627, 64
    %v1632 = vpop.permute.xlu0 %1631
    %1633 = vrot.lane.b32.xlu0 %v1628, 64
    %v1634 = vpop.permute.xlu0 %1633
    %v1637 = vadd.f32 %v112, %v1632
    %v1638 = vadd.f32 %v115, %v1634
    %v1639 = vtanh.pop %v1637
    %v1640 = vtanh.pop %v1638
    %v1641 = vsub.f32 1.0, %v1601
    %v1642 = vsub.f32 1.0, %v1616
    %1645 = vrot.lane.b32.xlu0 %v1639, 96
    %v1646 = vpop.permute.xlu0 %1645
    %1647 = vrot.lane.b32.xlu0 %v1640, 96
    %v1648 = vpop.permute.xlu0 %1647
    %v1651 = vmul.f32 %v1641, %v1646
    %v1652 = vmul.f32 %v1642, %v1648
    %v1653 = vrot.slane %v1456, 7
    %v1654 = vrot.slane %v1457, 7
    %v1657 = vmul.f32 %v1601, %v1653
    %v1658 = vmul.f32 %v1616, %v1654
    %v1659 = vadd.f32 %v1651, %v1657
    %v1660 = vadd.f32 %v1652, %v1658
    %v1663 = vrot.slane %v1659, 7
    %v1664 = vrot.slane %v1660, 6
    %v1665 = vsel %vm249, %v1664, %v1663
    %1666 = vrot.lane.b32.xlu0 %v1665, 96
    %v1667 = vpop.permute.xlu0 %1666
    %v1668 = vsel %vm87, %v1667, 0
    %1670 = vmatpush.msra.mxu0 0.0
    %1671 = vmatpush.msra.mxu0 0.0
    %1672 = vmatpush.msra.mxu0 0.0
    %1673 = vmatpush.msra.mxu0 0.0
    %1674 = vmatpush.msra.mxu0 0.0
    %1675 = vmatpush.msra.mxu0 0.0
    %1676 = vmatpush.msra.mxu0 0.0
    %1677 = vmatpush.msra.mxu0 0.0
    %1678 = vmatpush.msra.mxu0 0.0
    %1679 = vmatpush.msra.mxu0 0.0
    %1680 = vmatpush.msra.mxu0 0.0
    %1681 = vmatpush.msra.mxu0 0.0
    %1682 = vmatpush.msra.mxu0 %v125
    %1683 = vmatpush.msra.mxu0 %v124
    %1684 = vmatpush.msra.mxu0 %v123
    %1685 = vmatpush.msra.mxu0 %v122
    %1686 = vmatmul.f32.gmra.mxu0 %v1668
    %v1687 = vpop.f32.mrf.mxu0
    %v1688 = vadd.f32 %v245, %v1687
    %1689 = vdwg.mxu0
    %1691 = vrot.lane.b32.xlu0 %v1551, 96
    %v1692 = vpop.permute.xlu0 %1691
    %v1693 = vsel %vm87, %v1692, 0
    %1695 = vmatpush.msra.mxu0 0.0
    %1696 = vmatpush.msra.mxu0 0.0
    %1697 = vmatpush.msra.mxu0 0.0
    %1698 = vmatpush.msra.mxu0 0.0
    %1699 = vmatpush.msra.mxu0 0.0
    %1700 = vmatpush.msra.mxu0 0.0
    %1701 = vmatpush.msra.mxu0 0.0
    %1702 = vmatpush.msra.mxu0 0.0
    %1703 = vmatpush.msra.mxu0 0.0
    %1704 = vmatpush.msra.mxu0 0.0
    %1705 = vmatpush.msra.mxu0 0.0
    %1706 = vmatpush.msra.mxu0 0.0
    %1707 = vmatpush.msra.mxu0 %v130
    %1708 = vmatpush.msra.mxu0 %v129
    %1709 = vmatpush.msra.mxu0 %v128
    %1710 = vmatpush.msra.mxu0 %v127
    %1711 = vmatmul.f32.gmra.mxu0 %v1693
    %v1712 = vpop.f32.mrf.mxu0
    %v1713 = vadd.f32 0.0, %v1712
    %1714 = vdwg.mxu0
    %v1715 = vadd.f32 %v1688, %v1713
    %v1716 = vxor.u32 %v1715, 2147483648
    %v1717 = vmul.f32 %v1716, 1.442695
    %v1718 = vpow.pop %v1717
    %v1719 = vadd.f32 %v1718, 1.0
    %v1720 = vrcp.pop %v1719
    %v1721 = vmul.f32 %v1719, %v1720
    %v1722 = vsub.f32 1.0, %v1721
    %v1723 = vmul.f32 %v1720, %v1722
    %v1724 = vadd.f32 %v1720, %v1723
    %vm1725 = vweird.f32 %v1719
    %vm1726 = vweird.f32 %v1720
    %vm1727 = vmor %vm1725, %vm1726
    %v1728 = vsel %vm1727, %v1720, %v1724
    %v1729 = vand.u32 2147483647, %v1719
    %vm1730 = vcmp.eq.f32.partialorder %v1729, 8.507059e+37
    %v1731 = vand.u32 %v1719, 2147483648
    %v1732 = vor.u32 1.1754944e-38, %v1731
    %v1733 = vsel %vm1730, %v1732, %v1728
    %v1734 = vmul.f32 1.0, %v1733
    %v1735 = vadd.f32 %v1713, %v316
    %1737 = vrot.lane.b32.xlu0 %v1735, 64
    %v1738 = vpop.permute.xlu0 %1737
    %v1740 = vmul.f32 %v1734, %v1738
    %1742 = vrot.lane.b32.xlu0 %v1740, 64
    %v1743 = vpop.permute.xlu0 %1742
    %v1745 = vadd.f32 %v1688, %v1743
    %v1746 = vtanh.pop %v1745
    %v1747 = vsub.f32 1.0, %v1734
    %1749 = vrot.lane.b32.xlu0 %v1746, 96
    %v1750 = vpop.permute.xlu0 %1749
    %v1752 = vmul.f32 %v1747, %v1750
    %v1753 = vmul.f32 %v1734, %v1551
    %v1754 = vadd.f32 %v1752, %v1753
    %1756 = vrot.lane.b32.xlu0 %v1754, 96
    %v1757 = vpop.permute.xlu0 %1756
    %vm1759 = vcmask 254976
    %v1760 = vsel %vm1759, %v1757, 0.0
    %1761 = vadd.xlane.f32.xlu0 %v1760
    %v1762 = vpop.xlane.xlu0 %1761
    %v1763 = vrcp.pop 32.0
    %v1764 = vmul.f32 32.0, %v1763
    %v1765 = vsub.f32 1.0, %v1764
    %v1766 = vmul.f32 %v1763, %v1765
    %v1767 = vadd.f32 %v1763, %v1766
    %vm1768 = vweird.f32 %v1763
    %v1769 = vsel %vm1768, %v1763, %v1767
    %v1770 = vmul.f32 %v1762, %v1769
    %v1771 = vsub.f32 %v1754, %v1770
    %v1772 = vmul.f32 %v1771, %v1771
    %1774 = vrot.lane.b32.xlu0 %v1772, 96
    %v1775 = vpop.permute.xlu0 %1774
    %v1777 = vsel %vm1759, %v1775, 0.0
    %1778 = vadd.xlane.f32.xlu0 %v1777
    %v1779 = vpop.xlane.xlu0 %1778
    %v1780 = vmul.f32 %v1779, %v1769
    %v1781 = vadd.f32 %v1780, 1e-06
    %v1782 = vrsqrt.pop %v1781
    %v1783 = vmul.f32 %v1782, %v1781
    %v1784 = vmul.f32 %v1783, %v1782
    %v1785 = vmul.f32 0.5, %v1784
    %v1786 = vsub.f32 1.5, %v1785
    %v1787 = vmul.f32 %v1782, %v1786
    %vm1788 = vweird.f32 %v1781
    %vm1789 = vweird.f32 %v1782
    %vm1790 = vmor %vm1788, %vm1789
    %v1791 = vsel %vm1790, %v1782, %v1787
    %v1792 = vmul.f32 %v1771, %v1791
    %v1793 = vperm.slane %v133, 0
    %1795 = vrot.lane.b32.xlu0 %v1793, 32
    %v1796 = vpop.permute.xlu0 %1795
    %v1798 = vmul.f32 %v1792, %v1796
    %v1799 = vadd.f32 %v1798, %v1793
    %1801 = vrot.lane.b32.xlu0 %v1799, 96
    %v1802 = vpop.permute.xlu0 %1801
    %1804 = vst.msk [vmem:[#allocation10] sm:$0x3] %vm1759, %v1802
    // Predicated region
    $region34: #{enc_lstm_forward.1} parent=1 // pred_check
      _
    $region35: #{enc_lstm_forward.1} parent=1 // pred_check_branch
      %1806 = sbr.rel (0) target = $region37
    $region36: #{enc_lstm_forward.1} parent=1 // pred_region
      %1808 = vsyncadd [#allocation4], 0
      %s1810 = sshll.u32 [#allocation10], 4
      %s1811 = int_to_ptr.vmem [resolvable:$true] %s1810
      %s1812 = sshll.u32 %s4, 4
      %s1813 = int_to_ptr.hbm [resolvable:$true] %s1812
      %1815 = dma.vmem_to_hbm [thread:$0]  %s1811, 32, %s1813, [#allocation4]
    $region37: #{enc_lstm_forward.1} parent=1 // pred_fallthru
      _
    // Predicated region
    $region38: #{enc_lstm_forward.1} parent=1 // pred_check
      _
    $region39: #{enc_lstm_forward.1} parent=1 // pred_check_branch
      %1817 = sbr.rel (0) target = $region41
    $region40: #{enc_lstm_forward.1} parent=1 // pred_region
      %1819 = dma.done [#allocation4], 32
    $region41: #{enc_lstm_forward.1} parent=1 // pred_fallthru
      _
    %1820 = vsyncpa [#allocation3], 1
    %1821 = vsyncpa [#allocation6], 1
    %1822 = vsyncpa [#allocation9], 1
    %1823 = vsyncpa [#allocation4], 1

</llo_original>
